<compile_context>
chip_gen: v5e
topology: v5e:2x2
jax: 0.10.0
libtpu: 0.0.40
codegen_flags: <defaults>
</compile_context>

<pallas_src>
import functools
import math

import jax
import jax.numpy as jnp
from jax import lax
from jax.experimental import pallas as pl
from jax.experimental.pallas import tpu as pltpu


# ------------------------------- constants --------------------------------- #

D_MODEL = 32
VOCAB = 16
V_PAD = 128          # lane-padded vocab for a dense logits store
MAX_TAR_LEN = 8
C_IN = 4
C_FEAT = 32
FF_DIM = 64


# --------------------------- fused Pallas kernel --------------------------- #

def _htr_fused_kernel(
    # activations / precomputed constants
    patches_ref, pool_ref, onehot_ref, pos_ref, smask_ref, cmask_ref,
    # vision weights
    conv_w_ref, conv_b_ref, enc_w_ref, enc_b_ref,
    # decoder weights
    emb_ref,
    sa_qkv_w_ref, sa_qkv_b_ref, sa_o_w_ref, sa_o_b_ref,
    ca_q_w_ref, ca_q_b_ref, ca_kv_w_ref, ca_kv_b_ref, ca_o_w_ref, ca_o_b_ref,
    ff1_w_ref, ff1_b_ref, ff2_w_ref, ff2_b_ref,
    fc_w_ref, fc_b_ref,
    ln1_g_ref, ln1_b_ref, ln2_g_ref, ln2_b_ref, ln3_g_ref, ln3_b_ref,
    # outputs
    logits_ref, cross_attn_ref, self_attn_ref,
    *, B, T, S, D, scale):

  f32 = jnp.float32

  def mm(a, b):
    return jnp.dot(a, b, preferred_element_type=f32)

  def mm_nt(a, b):  # a @ b.T without materializing a transpose
    return lax.dot_general(a, b, (((1,), (1,)), ((), ())),
                           preferred_element_type=f32)

  def softmax(s):
    m = jnp.max(s, axis=-1, keepdims=True)
    p = jnp.exp(s - m)
    denom = jnp.sum(p, axis=-1, keepdims=True)
    return p * pl.reciprocal(denom, approx=True)

  def layer_norm(x, g, b, eps=1e-5):
    mu = jnp.mean(x, axis=-1, keepdims=True)
    var = jnp.mean(jnp.square(x - mu), axis=-1, keepdims=True)
    return (x - mu) * lax.rsqrt(var + eps) * g + b

  # ---- visual_extractor: 3x3 conv (im2col) + ReLU, mean over H (as matmul) ----
  conv = jnp.maximum(mm(patches_ref[...], conv_w_ref[...]) + conv_b_ref[...], 0.0)
  feat = mm(pool_ref[...], conv)                              # (B*S, C_FEAT)

  # ---- visual_encoder: Linear + ReLU ----
  enc = jnp.maximum(mm(feat, enc_w_ref[...]) + enc_b_ref[...], 0.0)   # (B*S, D)

  # ---- decoder: token embedding (one-hot matmul) + learned positional ----
  h = mm(onehot_ref[...], emb_ref[...]) + pos_ref[...]        # (B*T, D)

  # ---- masked self-attention (batch folded into rows; block-diag + causal mask) --
  qkv = mm(h, sa_qkv_w_ref[...]) + sa_qkv_b_ref[...]          # (B*T, 3D)
  q = qkv[:, 0:D]
  k = qkv[:, D:2 * D]
  v = qkv[:, 2 * D:3 * D]
  attn_s = softmax(mm_nt(q, k) * scale + smask_ref[...])      # (B*T, B*T)
  sa = mm(attn_s, v)                                          # (B*T, D)
  h = layer_norm(h + mm(sa, sa_o_w_ref[...]) + sa_o_b_ref[...],
                 ln1_g_ref[...], ln1_b_ref[...])
  for b in range(B):  # per-batch diagonal blocks -> (B, T, T)
    self_attn_ref[b] = attn_s[b * T:(b + 1) * T, b * T:(b + 1) * T]

  # ---- cross-attention over encoder features ----
  qc = mm(h, ca_q_w_ref[...]) + ca_q_b_ref[...]               # (B*T, D)
  kvc = mm(enc, ca_kv_w_ref[...]) + ca_kv_b_ref[...]          # (B*S, 2D)
  kc = kvc[:, 0:D]
  vc = kvc[:, D:2 * D]
  attn_c = softmax(mm_nt(qc, kc) * scale + cmask_ref[...])    # (B*T, B*S)
  ca = mm(attn_c, vc)                                         # (B*T, D)
  h = layer_norm(h + mm(ca, ca_o_w_ref[...]) + ca_o_b_ref[...],
                 ln2_g_ref[...], ln2_b_ref[...])
  for b in range(B):  # per-batch diagonal blocks -> (B, T, S)
    cross_attn_ref[b] = attn_c[b * T:(b + 1) * T, b * S:(b + 1) * S]

  # ---- feed-forward ----
  ff = jnp.maximum(mm(h, ff1_w_ref[...]) + ff1_b_ref[...], 0.0)
  ff = mm(ff, ff2_w_ref[...]) + ff2_b_ref[...]
  h = layer_norm(h + ff, ln3_g_ref[...], ln3_b_ref[...])

  # ---- output projection to (lane-padded) vocab ----
  logits_ref[...] = mm(h, fc_w_ref[...]) + fc_b_ref[...]      # (B*T, V_PAD)


# ------------------------------- parameters -------------------------------- #

def _xavier(key, shape, fan_in, fan_out):
  bound = math.sqrt(6.0 / (fan_in + fan_out))
  return jax.random.uniform(key, shape, jnp.float32, -bound, bound)


def init_params(key):
  keys = jax.random.split(key, 24)
  p = {}
  # visual_extractor: conv weight flattened (ky, kx, cin) x cout for im2col matmul
  p["conv_w"] = _xavier(keys[0], (9 * C_IN, C_FEAT), 9 * C_IN, 9 * C_FEAT)
  p["conv_b"] = jnp.zeros((C_FEAT,), jnp.float32)
  # visual_encoder
  p["enc_w"] = _xavier(keys[1], (C_FEAT, D_MODEL), C_FEAT, D_MODEL)
  p["enc_b"] = jnp.zeros((D_MODEL,), jnp.float32)
  # decoder embeddings
  p["embedding"] = _xavier(keys[2], (VOCAB, D_MODEL), VOCAB, D_MODEL)
  p["pos"] = _xavier(keys[3], (MAX_TAR_LEN, D_MODEL), MAX_TAR_LEN, D_MODEL)
  # attention projections
  names = ["sa_q", "sa_k", "sa_v", "sa_o", "ca_q", "ca_k", "ca_v", "ca_o"]
  for i, n in enumerate(names):
    p[n + "_w"] = _xavier(keys[4 + i], (D_MODEL, D_MODEL), D_MODEL, D_MODEL)
    p[n + "_b"] = jnp.zeros((D_MODEL,), jnp.float32)
  # feed-forward + output fc
  p["ff1_w"] = _xavier(keys[12], (D_MODEL, FF_DIM), D_MODEL, FF_DIM)
  p["ff1_b"] = jnp.zeros((FF_DIM,), jnp.float32)
  p["ff2_w"] = _xavier(keys[13], (FF_DIM, D_MODEL), FF_DIM, D_MODEL)
  p["ff2_b"] = jnp.zeros((D_MODEL,), jnp.float32)
  p["fc_w"] = _xavier(keys[14], (D_MODEL, VOCAB), D_MODEL, VOCAB)
  p["fc_b"] = jnp.zeros((VOCAB,), jnp.float32)
  # LayerNorm affine params (PyTorch nn.LayerNorm default: elementwise_affine=True)
  for n in ("ln1", "ln2", "ln3"):
    p[n + "_g"] = jnp.ones((D_MODEL,), jnp.float32)
    p[n + "_b"] = jnp.zeros((D_MODEL,), jnp.float32)
  return p


# -------------------------------- forward ---------------------------------- #

def htr_seq2seq_forward(params, source_nchw, target_tb):
  """Training-mode forward.

  Returns (out (T,B,V), 0, cross_attn (B,T,S), self_attn (B,T,T)).
  """
  B, Cin, H, W = source_nchw.shape
  S = W
  T = target_tb.shape[0]
  D = D_MODEL
  scale = 1.0 / math.sqrt(D)

  # ---- im2col patches (B*H*W, 9*Cin), rows ordered (b, h, w) -------------- #
  x = jnp.transpose(source_nchw, (0, 2, 3, 1))                 # NCHW -> NHWC
  xp = jnp.pad(x, ((0, 0), (1, 1), (1, 1), (0, 0)))
  cols = [xp[:, ky:ky + H, kx:kx + W, :] for ky in range(3) for kx in range(3)]
  patches = jnp.concatenate(cols, axis=-1).reshape(B * H * W, 9 * Cin)

  # ---- mean-over-H pooling matrix (B*S, B*H*W); feat = pool @ conv -------- #
  r = jnp.arange(B * W)
  c = jnp.arange(B * H * W)
  pool = ((((r[:, None] // W) == (c[None, :] // (H * W)))
           & ((r[:, None] % W) == (c[None, :] % W)))
          .astype(jnp.float32) / H)

  # ---- token one-hot (batch-major rows b*T+t) and tiled positional -------- #
  tgt = jnp.transpose(target_tb).reshape(B * T)                # (T,B) -> (B*T,)
  onehot = jax.nn.one_hot(tgt, VOCAB, dtype=jnp.float32)       # (B*T, VOCAB)
  pos_bt = jnp.tile(params["pos"][:T], (B, 1))                 # (B*T, D)

  # ---- additive masks: causal+same-batch (self), same-batch (cross) ------- #
  rd = jnp.arange(B * T)
  same_b = (rd[:, None] // T) == (rd[None, :] // T)
  causal = (rd[None, :] % T) <= (rd[:, None] % T)
  self_mask = jnp.where(same_b & causal, 0.0, -1e9).astype(jnp.float32)
  ce = jnp.arange(B * S)
  cross_mask = jnp.where((rd[:, None] // T) == (ce[None, :] // S),
                         0.0, -1e9).astype(jnp.float32)

  # ---- packed / padded weights -------------------------------------------- #
  sa_qkv_w = jnp.concatenate([params["sa_q_w"], params["sa_k_w"], params["sa_v_w"]], axis=1)
  sa_qkv_b = jnp.concatenate([params["sa_q_b"], params["sa_k_b"], params["sa_v_b"]])
  ca_kv_w = jnp.concatenate([params["ca_k_w"], params["ca_v_w"]], axis=1)
  ca_kv_b = jnp.concatenate([params["ca_k_b"], params["ca_v_b"]])
  fc_w = jnp.pad(params["fc_w"], ((0, 0), (0, V_PAD - VOCAB)))
  fc_b = jnp.pad(params["fc_b"], (0, V_PAD - VOCAB))

  row2 = lambda a: a.reshape(1, -1)

  inputs = (
      patches, pool, onehot, pos_bt, self_mask, cross_mask,
      params["conv_w"], row2(params["conv_b"]),
      params["enc_w"], row2(params["enc_b"]),
      params["embedding"],
      sa_qkv_w, row2(sa_qkv_b), params["sa_o_w"], row2(params["sa_o_b"]),
      params["ca_q_w"], row2(params["ca_q_b"]),
      ca_kv_w, row2(ca_kv_b), params["ca_o_w"], row2(params["ca_o_b"]),
      params["ff1_w"], row2(params["ff1_b"]),
      params["ff2_w"], row2(params["ff2_b"]),
      fc_w, row2(fc_b),
      row2(params["ln1_g"]), row2(params["ln1_b"]),
      row2(params["ln2_g"]), row2(params["ln2_b"]),
      row2(params["ln3_g"]), row2(params["ln3_b"]),
  )

  vmem = lambda: pl.BlockSpec(memory_space=pltpu.MemorySpace.VMEM)

  logits, cross_attn, self_attn = pl.pallas_call(
      functools.partial(_htr_fused_kernel, B=B, T=T, S=S, D=D, scale=scale),
      out_shape=(jax.ShapeDtypeStruct((B * T, V_PAD), jnp.float32),
                 jax.ShapeDtypeStruct((B, T, S), jnp.float32),
                 jax.ShapeDtypeStruct((B, T, T), jnp.float32)),
      in_specs=[vmem() for _ in inputs],
      out_specs=(vmem(), vmem(), vmem()),
  )(*inputs)

  # slice off vocab lane padding; reorder time-first like the PyTorch decoder
  out = jnp.transpose(logits[:, :VOCAB].reshape(B, T, VOCAB), (1, 0, 2))
  return out, 0, cross_attn, self_attn


# --------------------------------- main ------------------------------------ #

if __name__ == "__main__":
  key = jax.random.PRNGKey(0)
  pkey, skey, tkey = jax.random.split(key, 3)

  params = init_params(pkey)
  source = jax.random.normal(skey, (2, C_IN, 16, 16), jnp.float32)          # NCHW
  target = jax.random.randint(tkey, (MAX_TAR_LEN, 2), 3, VOCAB, jnp.int32)  # (T, B)

  fwd = jax.jit(htr_seq2seq_forward)
  out, zero, cross_attn, self_attn = fwd(params, source, target)
  jax.block_until_ready((out, cross_attn, self_attn))

  assert out.shape == (MAX_TAR_LEN, 2, VOCAB)
  assert cross_attn.shape == (2, MAX_TAR_LEN, 16)
  assert self_attn.shape == (2, MAX_TAR_LEN, MAX_TAR_LEN)
  assert bool(jnp.all(jnp.isfinite(out)))
  # attention rows should normalize to ~1 (approx reciprocal tolerance)
  assert bool(jnp.all(jnp.abs(jnp.sum(self_attn, -1) - 1.0) < 1e-2))

  print("KERNEL_OK")
</pallas_src>

<mosaic_0001>
module attributes {stable_mosaic.version = 11 : i64} {
  func.func @_htr_fused_kernel(%arg0: memref<512x36xf32, #tpu.memory_space<vmem>>, %arg1: memref<32x512xf32, #tpu.memory_space<vmem>>, %arg2: memref<16x16xf32, #tpu.memory_space<vmem>>, %arg3: memref<16x32xf32, #tpu.memory_space<vmem>>, %arg4: memref<16x16xf32, #tpu.memory_space<vmem>>, %arg5: memref<16x32xf32, #tpu.memory_space<vmem>>, %arg6: memref<36x32xf32, #tpu.memory_space<vmem>>, %arg7: memref<1x32xf32, #tpu.memory_space<vmem>>, %arg8: memref<32x32xf32, #tpu.memory_space<vmem>>, %arg9: memref<1x32xf32, #tpu.memory_space<vmem>>, %arg10: memref<16x32xf32, #tpu.memory_space<vmem>>, %arg11: memref<32x96xf32, #tpu.memory_space<vmem>>, %arg12: memref<1x96xf32, #tpu.memory_space<vmem>>, %arg13: memref<32x32xf32, #tpu.memory_space<vmem>>, %arg14: memref<1x32xf32, #tpu.memory_space<vmem>>, %arg15: memref<32x32xf32, #tpu.memory_space<vmem>>, %arg16: memref<1x32xf32, #tpu.memory_space<vmem>>, %arg17: memref<32x64xf32, #tpu.memory_space<vmem>>, %arg18: memref<1x64xf32, #tpu.memory_space<vmem>>, %arg19: memref<32x32xf32, #tpu.memory_space<vmem>>, %arg20: memref<1x32xf32, #tpu.memory_space<vmem>>, %arg21: memref<32x64xf32, #tpu.memory_space<vmem>>, %arg22: memref<1x64xf32, #tpu.memory_space<vmem>>, %arg23: memref<64x32xf32, #tpu.memory_space<vmem>>, %arg24: memref<1x32xf32, #tpu.memory_space<vmem>>, %arg25: memref<32x128xf32, #tpu.memory_space<vmem>>, %arg26: memref<1x128xf32, #tpu.memory_space<vmem>>, %arg27: memref<1x32xf32, #tpu.memory_space<vmem>>, %arg28: memref<1x32xf32, #tpu.memory_space<vmem>>, %arg29: memref<1x32xf32, #tpu.memory_space<vmem>>, %arg30: memref<1x32xf32, #tpu.memory_space<vmem>>, %arg31: memref<1x32xf32, #tpu.memory_space<vmem>>, %arg32: memref<1x32xf32, #tpu.memory_space<vmem>>, %arg33: memref<16x128xf32, #tpu.memory_space<vmem>>, %arg34: memref<2x8x16xf32, #tpu.memory_space<vmem>>, %arg35: memref<2x8x8xf32, #tpu.memory_space<vmem>>) attributes {dimension_semantics = [], scalar_prefetch = 0 : i64, scratch_operands = 0 : i64, tpu.core_type = #tpu.core_type<tc>} {
    %c0 = arith.constant 0 : index
    %c0_0 = arith.constant 0 : index
    %0 = vector.load %arg0[%c0, %c0_0] : memref<512x36xf32, #tpu.memory_space<vmem>>, vector<512x36xf32>
    %c0_1 = arith.constant 0 : index
    %c0_2 = arith.constant 0 : index
    %1 = vector.load %arg6[%c0_1, %c0_2] : memref<36x32xf32, #tpu.memory_space<vmem>>, vector<36x32xf32>
    %cst = arith.constant dense<0.000000e+00> : vector<512x32xf32>
    %2 = tpu.matmul %0, %1, %cst {dimension_numbers = #tpu.dot_dimension_numbers<[1], [0], [0], [1], [0, 0, 1, 1], [], []>} : vector<512x36xf32>, vector<36x32xf32>, vector<512x32xf32> -> vector<512x32xf32>
    %c0_3 = arith.constant 0 : index
    %c0_4 = arith.constant 0 : index
    %3 = vector.load %arg7[%c0_3, %c0_4] : memref<1x32xf32, #tpu.memory_space<vmem>>, vector<1x32xf32>
    %4 = vector.broadcast %3 : vector<1x32xf32> to vector<512x32xf32>
    %5 = arith.addf %2, %4 : vector<512x32xf32>
    %cst_5 = arith.constant 0.000000e+00 : f32
    %6 = vector.broadcast %cst_5 : f32 to vector<512x32xf32>
    %7 = arith.maximumf %5, %6 : vector<512x32xf32>
    %c0_6 = arith.constant 0 : index
    %c0_7 = arith.constant 0 : index
    %8 = vector.load %arg1[%c0_6, %c0_7] : memref<32x512xf32, #tpu.memory_space<vmem>>, vector<32x512xf32>
    %cst_8 = arith.constant dense<0.000000e+00> : vector<32x32xf32>
    %9 = tpu.matmul %8, %7, %cst_8 {dimension_numbers = #tpu.dot_dimension_numbers<[1], [0], [0], [1], [0, 0, 1, 1], [], []>} : vector<32x512xf32>, vector<512x32xf32>, vector<32x32xf32> -> vector<32x32xf32>
    %c0_9 = arith.constant 0 : index
    %c0_10 = arith.constant 0 : index
    %10 = vector.load %arg8[%c0_9, %c0_10] : memref<32x32xf32, #tpu.memory_space<vmem>>, vector<32x32xf32>
    %cst_11 = arith.constant dense<0.000000e+00> : vector<32x32xf32>
    %11 = tpu.matmul %9, %10, %cst_11 {dimension_numbers = #tpu.dot_dimension_numbers<[1], [0], [0], [1], [0, 0, 1, 1], [], []>} : vector<32x32xf32>, vector<32x32xf32>, vector<32x32xf32> -> vector<32x32xf32>
    %c0_12 = arith.constant 0 : index
    %c0_13 = arith.constant 0 : index
    %12 = vector.load %arg9[%c0_12, %c0_13] : memref<1x32xf32, #tpu.memory_space<vmem>>, vector<1x32xf32>
    %13 = vector.broadcast %12 : vector<1x32xf32> to vector<32x32xf32>
    %14 = arith.addf %11, %13 : vector<32x32xf32>
    %cst_14 = arith.constant 0.000000e+00 : f32
    %15 = vector.broadcast %cst_14 : f32 to vector<32x32xf32>
    %16 = arith.maximumf %14, %15 : vector<32x32xf32>
    %c0_15 = arith.constant 0 : index
    %c0_16 = arith.constant 0 : index
    %17 = vector.load %arg2[%c0_15, %c0_16] : memref<16x16xf32, #tpu.memory_space<vmem>>, vector<16x16xf32>
    %c0_17 = arith.constant 0 : index
    %c0_18 = arith.constant 0 : index
    %18 = vector.load %arg10[%c0_17, %c0_18] : memref<16x32xf32, #tpu.memory_space<vmem>>, vector<16x32xf32>
    %cst_19 = arith.constant dense<0.000000e+00> : vector<16x32xf32>
    %19 = tpu.matmul %17, %18, %cst_19 {dimension_numbers = #tpu.dot_dimension_numbers<[1], [0], [0], [1], [0, 0, 1, 1], [], []>} : vector<16x16xf32>, vector<16x32xf32>, vector<16x32xf32> -> vector<16x32xf32>
    %c0_20 = arith.constant 0 : index
    %c0_21 = arith.constant 0 : index
    %20 = vector.load %arg3[%c0_20, %c0_21] : memref<16x32xf32, #tpu.memory_space<vmem>>, vector<16x32xf32>
    %21 = arith.addf %19, %20 : vector<16x32xf32>
    %c0_22 = arith.constant 0 : index
    %c0_23 = arith.constant 0 : index
    %22 = vector.load %arg11[%c0_22, %c0_23] : memref<32x96xf32, #tpu.memory_space<vmem>>, vector<32x96xf32>
    %cst_24 = arith.constant dense<0.000000e+00> : vector<16x96xf32>
    %23 = tpu.matmul %21, %22, %cst_24 {dimension_numbers = #tpu.dot_dimension_numbers<[1], [0], [0], [1], [0, 0, 1, 1], [], []>} : vector<16x32xf32>, vector<32x96xf32>, vector<16x96xf32> -> vector<16x96xf32>
    %c0_25 = arith.constant 0 : index
    %c0_26 = arith.constant 0 : index
    %24 = vector.load %arg12[%c0_25, %c0_26] : memref<1x96xf32, #tpu.memory_space<vmem>>, vector<1x96xf32>
    %25 = vector.broadcast %24 : vector<1x96xf32> to vector<16x96xf32>
    %26 = arith.addf %23, %25 : vector<16x96xf32>
    %27 = vector.extract_strided_slice %26 {offsets = [0, 0], sizes = [16, 32], strides = [1, 1]} : vector<16x96xf32> to vector<16x32xf32>
    %28 = vector.extract_strided_slice %26 {offsets = [0, 32], sizes = [16, 32], strides = [1, 1]} : vector<16x96xf32> to vector<16x32xf32>
    %29 = vector.extract_strided_slice %26 {offsets = [0, 64], sizes = [16, 32], strides = [1, 1]} : vector<16x96xf32> to vector<16x32xf32>
    %cst_27 = arith.constant dense<0.000000e+00> : vector<16x16xf32>
    %30 = tpu.matmul %27, %28, %cst_27 {dimension_numbers = #tpu.dot_dimension_numbers<[1], [1], [0], [0], [0, 0, 1, 0], [], []>} : vector<16x32xf32>, vector<16x32xf32>, vector<16x16xf32> -> vector<16x16xf32>
    %cst_28 = arith.constant 0.176776692 : f32
    %31 = vector.broadcast %cst_28 : f32 to vector<16x16xf32>
    %32 = arith.mulf %30, %31 : vector<16x16xf32>
    %c0_29 = arith.constant 0 : index
    %c0_30 = arith.constant 0 : index
    %33 = vector.load %arg4[%c0_29, %c0_30] : memref<16x16xf32, #tpu.memory_space<vmem>>, vector<16x16xf32>
    %34 = arith.addf %32, %33 : vector<16x16xf32>
    %cst_31 = arith.constant dense<0xFF800000> : vector<16xf32>
    %35 = vector.multi_reduction <maximumf>, %34, %cst_31 [1] : vector<16x16xf32> to vector<16xf32>
    %36 = vector.shape_cast %35 : vector<16xf32> to vector<16x1xf32>
    %37 = vector.broadcast %36 : vector<16x1xf32> to vector<16x16xf32>
    %38 = arith.subf %34, %37 : vector<16x16xf32>
    %39 = math.exp %38 : vector<16x16xf32>
    %cst_32 = arith.constant dense<0.000000e+00> : vector<16xf32>
    %40 = vector.multi_reduction <add>, %39, %cst_32 [1] : vector<16x16xf32> to vector<16xf32>
    %41 = vector.shape_cast %40 : vector<16xf32> to vector<16x1xf32>
    %42 = tpu.reciprocal %41 {approx = true} : vector<16x1xf32> -> vector<16x1xf32>
    %43 = vector.broadcast %42 : vector<16x1xf32> to vector<16x16xf32>
    %44 = arith.mulf %39, %43 : vector<16x16xf32>
    %cst_33 = arith.constant dense<0.000000e+00> : vector<16x32xf32>
    %45 = tpu.matmul %44, %29, %cst_33 {dimension_numbers = #tpu.dot_dimension_numbers<[1], [0], [0], [1], [0, 0, 1, 1], [], []>} : vector<16x16xf32>, vector<16x32xf32>, vector<16x32xf32> -> vector<16x32xf32>
    %c0_34 = arith.constant 0 : index
    %c0_35 = arith.constant 0 : index
    %46 = vector.load %arg13[%c0_34, %c0_35] : memref<32x32xf32, #tpu.memory_space<vmem>>, vector<32x32xf32>
    %cst_36 = arith.constant dense<0.000000e+00> : vector<16x32xf32>
    %47 = tpu.matmul %45, %46, %cst_36 {dimension_numbers = #tpu.dot_dimension_numbers<[1], [0], [0], [1], [0, 0, 1, 1], [], []>} : vector<16x32xf32>, vector<32x32xf32>, vector<16x32xf32> -> vector<16x32xf32>
    %48 = arith.addf %21, %47 : vector<16x32xf32>
    %c0_37 = arith.constant 0 : index
    %c0_38 = arith.constant 0 : index
    %49 = vector.load %arg14[%c0_37, %c0_38] : memref<1x32xf32, #tpu.memory_space<vmem>>, vector<1x32xf32>
    %50 = vector.broadcast %49 : vector<1x32xf32> to vector<16x32xf32>
    %51 = arith.addf %48, %50 : vector<16x32xf32>
    %c0_39 = arith.constant 0 : index
    %c0_40 = arith.constant 0 : index
    %52 = vector.load %arg27[%c0_39, %c0_40] : memref<1x32xf32, #tpu.memory_space<vmem>>, vector<1x32xf32>
    %c0_41 = arith.constant 0 : index
    %c0_42 = arith.constant 0 : index
    %53 = vector.load %arg28[%c0_41, %c0_42] : memref<1x32xf32, #tpu.memory_space<vmem>>, vector<1x32xf32>
    %cst_43 = arith.constant dense<0.000000e+00> : vector<16xf32>
    %54 = vector.multi_reduction <add>, %51, %cst_43 [1] : vector<16x32xf32> to vector<16xf32>
    %55 = vector.shape_cast %54 : vector<16xf32> to vector<16x1xf32>
    %cst_44 = arith.constant 3.200000e+01 : f32
    %56 = vector.broadcast %cst_44 : f32 to vector<16x1xf32>
    %57 = arith.divf %55, %56 : vector<16x1xf32>
    %58 = vector.broadcast %57 : vector<16x1xf32> to vector<16x32xf32>
    %59 = arith.subf %51, %58 : vector<16x32xf32>
    %60 = arith.mulf %59, %59 : vector<16x32xf32>
    %cst_45 = arith.constant dense<0.000000e+00> : vector<16xf32>
    %61 = vector.multi_reduction <add>, %60, %cst_45 [1] : vector<16x32xf32> to vector<16xf32>
    %62 = vector.shape_cast %61 : vector<16xf32> to vector<16x1xf32>
    %cst_46 = arith.constant 3.200000e+01 : f32
    %63 = vector.broadcast %cst_46 : f32 to vector<16x1xf32>
    %64 = arith.divf %62, %63 : vector<16x1xf32>
    %65 = vector.broadcast %57 : vector<16x1xf32> to vector<16x32xf32>
    %66 = arith.subf %51, %65 : vector<16x32xf32>
    %cst_47 = arith.constant 9.99999974E-6 : f32
    %67 = vector.broadcast %cst_47 : f32 to vector<16x1xf32>
    %68 = arith.addf %64, %67 : vector<16x1xf32>
    %69 = math.rsqrt %68 : vector<16x1xf32>
    %70 = vector.broadcast %69 : vector<16x1xf32> to vector<16x32xf32>
    %71 = arith.mulf %66, %70 : vector<16x32xf32>
    %72 = vector.broadcast %52 : vector<1x32xf32> to vector<16x32xf32>
    %73 = arith.mulf %71, %72 : vector<16x32xf32>
    %74 = vector.broadcast %53 : vector<1x32xf32> to vector<16x32xf32>
    %75 = arith.addf %73, %74 : vector<16x32xf32>
    %76 = vector.extract_strided_slice %44 {offsets = [0, 0], sizes = [8, 8], strides = [1, 1]} : vector<16x16xf32> to vector<8x8xf32>
    %c0_48 = arith.constant 0 : index
    %c0_49 = arith.constant 0 : index
    %c0_50 = arith.constant 0 : index
    %77 = vector.load %arg35[%c0_48, %c0_49, %c0_50] : memref<2x8x8xf32, #tpu.memory_space<vmem>>, vector<1x8x8xf32>
    %78 = vector.shape_cast %77 : vector<1x8x8xf32> to vector<8x8xf32>
    %79 = vector.shape_cast %76 : vector<8x8xf32> to vector<1x8x8xf32>
    tpu.vector_store %arg35[%c0_48, %c0_49, %c0_50], %79 {strides = array<i32>} : memref<2x8x8xf32, #tpu.memory_space<vmem>>, vector<1x8x8xf32>,
    %80 = vector.extract_strided_slice %44 {offsets = [8, 8], sizes = [8, 8], strides = [1, 1]} : vector<16x16xf32> to vector<8x8xf32>
    %c1 = arith.constant 1 : index
    %c0_51 = arith.constant 0 : index
    %c0_52 = arith.constant 0 : index
    %81 = vector.load %arg35[%c1, %c0_51, %c0_52] : memref<2x8x8xf32, #tpu.memory_space<vmem>>, vector<1x8x8xf32>
    %82 = vector.shape_cast %81 : vector<1x8x8xf32> to vector<8x8xf32>
    %83 = vector.shape_cast %80 : vector<8x8xf32> to vector<1x8x8xf32>
    tpu.vector_store %arg35[%c1, %c0_51, %c0_52], %83 {strides = array<i32>} : memref<2x8x8xf32, #tpu.memory_space<vmem>>, vector<1x8x8xf32>,
    %c0_53 = arith.constant 0 : index
    %c0_54 = arith.constant 0 : index
    %84 = vector.load %arg15[%c0_53, %c0_54] : memref<32x32xf32, #tpu.memory_space<vmem>>, vector<32x32xf32>
    %cst_55 = arith.constant dense<0.000000e+00> : vector<16x32xf32>
    %85 = tpu.matmul %75, %84, %cst_55 {dimension_numbers = #tpu.dot_dimension_numbers<[1], [0], [0], [1], [0, 0, 1, 1], [], []>} : vector<16x32xf32>, vector<32x32xf32>, vector<16x32xf32> -> vector<16x32xf32>
    %c0_56 = arith.constant 0 : index
    %c0_57 = arith.constant 0 : index
    %86 = vector.load %arg16[%c0_56, %c0_57] : memref<1x32xf32, #tpu.memory_space<vmem>>, vector<1x32xf32>
    %87 = vector.broadcast %86 : vector<1x32xf32> to vector<16x32xf32>
    %88 = arith.addf %85, %87 : vector<16x32xf32>
    %c0_58 = arith.constant 0 : index
    %c0_59 = arith.constant 0 : index
    %89 = vector.load %arg17[%c0_58, %c0_59] : memref<32x64xf32, #tpu.memory_space<vmem>>, vector<32x64xf32>
    %cst_60 = arith.constant dense<0.000000e+00> : vector<32x64xf32>
    %90 = tpu.matmul %16, %89, %cst_60 {dimension_numbers = #tpu.dot_dimension_numbers<[1], [0], [0], [1], [0, 0, 1, 1], [], []>} : vector<32x32xf32>, vector<32x64xf32>, vector<32x64xf32> -> vector<32x64xf32>
    %c0_61 = arith.constant 0 : index
    %c0_62 = arith.constant 0 : index
    %91 = vector.load %arg18[%c0_61, %c0_62] : memref<1x64xf32, #tpu.memory_space<vmem>>, vector<1x64xf32>
    %92 = vector.broadcast %91 : vector<1x64xf32> to vector<32x64xf32>
    %93 = arith.addf %90, %92 : vector<32x64xf32>
    %94 = vector.extract_strided_slice %93 {offsets = [0, 0], sizes = [32, 32], strides = [1, 1]} : vector<32x64xf32> to vector<32x32xf32>
    %95 = vector.extract_strided_slice %93 {offsets = [0, 32], sizes = [32, 32], strides = [1, 1]} : vector<32x64xf32> to vector<32x32xf32>
    %cst_63 = arith.constant dense<0.000000e+00> : vector<16x32xf32>
    %96 = tpu.matmul %88, %94, %cst_63 {dimension_numbers = #tpu.dot_dimension_numbers<[1], [1], [0], [0], [0, 0, 1, 0], [], []>} : vector<16x32xf32>, vector<32x32xf32>, vector<16x32xf32> -> vector<16x32xf32>
    %cst_64 = arith.constant 0.176776692 : f32
    %97 = vector.broadcast %cst_64 : f32 to vector<16x32xf32>
    %98 = arith.mulf %96, %97 : vector<16x32xf32>
    %c0_65 = arith.constant 0 : index
    %c0_66 = arith.constant 0 : index
    %99 = vector.load %arg5[%c0_65, %c0_66] : memref<16x32xf32, #tpu.memory_space<vmem>>, vector<16x32xf32>
    %100 = arith.addf %98, %99 : vector<16x32xf32>
    %cst_67 = arith.constant dense<0xFF800000> : vector<16xf32>
    %101 = vector.multi_reduction <maximumf>, %100, %cst_67 [1] : vector<16x32xf32> to vector<16xf32>
    %102 = vector.shape_cast %101 : vector<16xf32> to vector<16x1xf32>
    %103 = vector.broadcast %102 : vector<16x1xf32> to vector<16x32xf32>
    %104 = arith.subf %100, %103 : vector<16x32xf32>
    %105 = math.exp %104 : vector<16x32xf32>
    %cst_68 = arith.constant dense<0.000000e+00> : vector<16xf32>
    %106 = vector.multi_reduction <add>, %105, %cst_68 [1] : vector<16x32xf32> to vector<16xf32>
    %107 = vector.shape_cast %106 : vector<16xf32> to vector<16x1xf32>
    %108 = tpu.reciprocal %107 {approx = true} : vector<16x1xf32> -> vector<16x1xf32>
    %109 = vector.broadcast %108 : vector<16x1xf32> to vector<16x32xf32>
    %110 = arith.mulf %105, %109 : vector<16x32xf32>
    %cst_69 = arith.constant dense<0.000000e+00> : vector<16x32xf32>
    %111 = tpu.matmul %110, %95, %cst_69 {dimension_numbers = #tpu.dot_dimension_numbers<[1], [0], [0], [1], [0, 0, 1, 1], [], []>} : vector<16x32xf32>, vector<32x32xf32>, vector<16x32xf32> -> vector<16x32xf32>
    %c0_70 = arith.constant 0 : index
    %c0_71 = arith.constant 0 : index
    %112 = vector.load %arg19[%c0_70, %c0_71] : memref<32x32xf32, #tpu.memory_space<vmem>>, vector<32x32xf32>
    %cst_72 = arith.constant dense<0.000000e+00> : vector<16x32xf32>
    %113 = tpu.matmul %111, %112, %cst_72 {dimension_numbers = #tpu.dot_dimension_numbers<[1], [0], [0], [1], [0, 0, 1, 1], [], []>} : vector<16x32xf32>, vector<32x32xf32>, vector<16x32xf32> -> vector<16x32xf32>
    %114 = arith.addf %75, %113 : vector<16x32xf32>
    %c0_73 = arith.constant 0 : index
    %c0_74 = arith.constant 0 : index
    %115 = vector.load %arg20[%c0_73, %c0_74] : memref<1x32xf32, #tpu.memory_space<vmem>>, vector<1x32xf32>
    %116 = vector.broadcast %115 : vector<1x32xf32> to vector<16x32xf32>
    %117 = arith.addf %114, %116 : vector<16x32xf32>
    %c0_75 = arith.constant 0 : index
    %c0_76 = arith.constant 0 : index
    %118 = vector.load %arg29[%c0_75, %c0_76] : memref<1x32xf32, #tpu.memory_space<vmem>>, vector<1x32xf32>
    %c0_77 = arith.constant 0 : index
    %c0_78 = arith.constant 0 : index
    %119 = vector.load %arg30[%c0_77, %c0_78] : memref<1x32xf32, #tpu.memory_space<vmem>>, vector<1x32xf32>
    %cst_79 = arith.constant dense<0.000000e+00> : vector<16xf32>
    %120 = vector.multi_reduction <add>, %117, %cst_79 [1] : vector<16x32xf32> to vector<16xf32>
    %121 = vector.shape_cast %120 : vector<16xf32> to vector<16x1xf32>
    %cst_80 = arith.constant 3.200000e+01 : f32
    %122 = vector.broadcast %cst_80 : f32 to vector<16x1xf32>
    %123 = arith.divf %121, %122 : vector<16x1xf32>
    %124 = vector.broadcast %123 : vector<16x1xf32> to vector<16x32xf32>
    %125 = arith.subf %117, %124 : vector<16x32xf32>
    %126 = arith.mulf %125, %125 : vector<16x32xf32>
    %cst_81 = arith.constant dense<0.000000e+00> : vector<16xf32>
    %127 = vector.multi_reduction <add>, %126, %cst_81 [1] : vector<16x32xf32> to vector<16xf32>
    %128 = vector.shape_cast %127 : vector<16xf32> to vector<16x1xf32>
    %cst_82 = arith.constant 3.200000e+01 : f32
    %129 = vector.broadcast %cst_82 : f32 to vector<16x1xf32>
    %130 = arith.divf %128, %129 : vector<16x1xf32>
    %131 = vector.broadcast %123 : vector<16x1xf32> to vector<16x32xf32>
    %132 = arith.subf %117, %131 : vector<16x32xf32>
    %cst_83 = arith.constant 9.99999974E-6 : f32
    %133 = vector.broadcast %cst_83 : f32 to vector<16x1xf32>
    %134 = arith.addf %130, %133 : vector<16x1xf32>
    %135 = math.rsqrt %134 : vector<16x1xf32>
    %136 = vector.broadcast %135 : vector<16x1xf32> to vector<16x32xf32>
    %137 = arith.mulf %132, %136 : vector<16x32xf32>
    %138 = vector.broadcast %118 : vector<1x32xf32> to vector<16x32xf32>
    %139 = arith.mulf %137, %138 : vector<16x32xf32>
    %140 = vector.broadcast %119 : vector<1x32xf32> to vector<16x32xf32>
    %141 = arith.addf %139, %140 : vector<16x32xf32>
    %142 = vector.extract_strided_slice %110 {offsets = [0, 0], sizes = [8, 16], strides = [1, 1]} : vector<16x32xf32> to vector<8x16xf32>
    %c0_84 = arith.constant 0 : index
    %c0_85 = arith.constant 0 : index
    %c0_86 = arith.constant 0 : index
    %143 = vector.load %arg34[%c0_84, %c0_85, %c0_86] : memref<2x8x16xf32, #tpu.memory_space<vmem>>, vector<1x8x16xf32>
    %144 = vector.shape_cast %143 : vector<1x8x16xf32> to vector<8x16xf32>
    %145 = vector.shape_cast %142 : vector<8x16xf32> to vector<1x8x16xf32>
    tpu.vector_store %arg34[%c0_84, %c0_85, %c0_86], %145 {strides = array<i32>} : memref<2x8x16xf32, #tpu.memory_space<vmem>>, vector<1x8x16xf32>,
    %146 = vector.extract_strided_slice %110 {offsets = [8, 16], sizes = [8, 16], strides = [1, 1]} : vector<16x32xf32> to vector<8x16xf32>
    %c1_87 = arith.constant 1 : index
    %c0_88 = arith.constant 0 : index
    %c0_89 = arith.constant 0 : index
    %147 = vector.load %arg34[%c1_87, %c0_88, %c0_89] : memref<2x8x16xf32, #tpu.memory_space<vmem>>, vector<1x8x16xf32>
    %148 = vector.shape_cast %147 : vector<1x8x16xf32> to vector<8x16xf32>
    %149 = vector.shape_cast %146 : vector<8x16xf32> to vector<1x8x16xf32>
    tpu.vector_store %arg34[%c1_87, %c0_88, %c0_89], %149 {strides = array<i32>} : memref<2x8x16xf32, #tpu.memory_space<vmem>>, vector<1x8x16xf32>,
    %c0_90 = arith.constant 0 : index
    %c0_91 = arith.constant 0 : index
    %150 = vector.load %arg21[%c0_90, %c0_91] : memref<32x64xf32, #tpu.memory_space<vmem>>, vector<32x64xf32>
    %cst_92 = arith.constant dense<0.000000e+00> : vector<16x64xf32>
    %151 = tpu.matmul %141, %150, %cst_92 {dimension_numbers = #tpu.dot_dimension_numbers<[1], [0], [0], [1], [0, 0, 1, 1], [], []>} : vector<16x32xf32>, vector<32x64xf32>, vector<16x64xf32> -> vector<16x64xf32>
    %c0_93 = arith.constant 0 : index
    %c0_94 = arith.constant 0 : index
    %152 = vector.load %arg22[%c0_93, %c0_94] : memref<1x64xf32, #tpu.memory_space<vmem>>, vector<1x64xf32>
    %153 = vector.broadcast %152 : vector<1x64xf32> to vector<16x64xf32>
    %154 = arith.addf %151, %153 : vector<16x64xf32>
    %cst_95 = arith.constant 0.000000e+00 : f32
    %155 = vector.broadcast %cst_95 : f32 to vector<16x64xf32>
    %156 = arith.maximumf %154, %155 : vector<16x64xf32>
    %c0_96 = arith.constant 0 : index
    %c0_97 = arith.constant 0 : index
    %157 = vector.load %arg23[%c0_96, %c0_97] : memref<64x32xf32, #tpu.memory_space<vmem>>, vector<64x32xf32>
    %cst_98 = arith.constant dense<0.000000e+00> : vector<16x32xf32>
    %158 = tpu.matmul %156, %157, %cst_98 {dimension_numbers = #tpu.dot_dimension_numbers<[1], [0], [0], [1], [0, 0, 1, 1], [], []>} : vector<16x64xf32>, vector<64x32xf32>, vector<16x32xf32> -> vector<16x32xf32>
    %c0_99 = arith.constant 0 : index
    %c0_100 = arith.constant 0 : index
    %159 = vector.load %arg24[%c0_99, %c0_100] : memref<1x32xf32, #tpu.memory_space<vmem>>, vector<1x32xf32>
    %160 = vector.broadcast %159 : vector<1x32xf32> to vector<16x32xf32>
    %161 = arith.addf %158, %160 : vector<16x32xf32>
    %162 = arith.addf %141, %161 : vector<16x32xf32>
    %c0_101 = arith.constant 0 : index
    %c0_102 = arith.constant 0 : index
    %163 = vector.load %arg31[%c0_101, %c0_102] : memref<1x32xf32, #tpu.memory_space<vmem>>, vector<1x32xf32>
    %c0_103 = arith.constant 0 : index
    %c0_104 = arith.constant 0 : index
    %164 = vector.load %arg32[%c0_103, %c0_104] : memref<1x32xf32, #tpu.memory_space<vmem>>, vector<1x32xf32>
    %cst_105 = arith.constant dense<0.000000e+00> : vector<16xf32>
    %165 = vector.multi_reduction <add>, %162, %cst_105 [1] : vector<16x32xf32> to vector<16xf32>
    %166 = vector.shape_cast %165 : vector<16xf32> to vector<16x1xf32>
    %cst_106 = arith.constant 3.200000e+01 : f32
    %167 = vector.broadcast %cst_106 : f32 to vector<16x1xf32>
    %168 = arith.divf %166, %167 : vector<16x1xf32>
    %169 = vector.broadcast %168 : vector<16x1xf32> to vector<16x32xf32>
    %170 = arith.subf %162, %169 : vector<16x32xf32>
    %171 = arith.mulf %170, %170 : vector<16x32xf32>
    %cst_107 = arith.constant dense<0.000000e+00> : vector<16xf32>
    %172 = vector.multi_reduction <add>, %171, %cst_107 [1] : vector<16x32xf32> to vector<16xf32>
    %173 = vector.shape_cast %172 : vector<16xf32> to vector<16x1xf32>
    %cst_108 = arith.constant 3.200000e+01 : f32
    %174 = vector.broadcast %cst_108 : f32 to vector<16x1xf32>
    %175 = arith.divf %173, %174 : vector<16x1xf32>
    %176 = vector.broadcast %168 : vector<16x1xf32> to vector<16x32xf32>
    %177 = arith.subf %162, %176 : vector<16x32xf32>
    %cst_109 = arith.constant 9.99999974E-6 : f32
    %178 = vector.broadcast %cst_109 : f32 to vector<16x1xf32>
    %179 = arith.addf %175, %178 : vector<16x1xf32>
    %180 = math.rsqrt %179 : vector<16x1xf32>
    %181 = vector.broadcast %180 : vector<16x1xf32> to vector<16x32xf32>
    %182 = arith.mulf %177, %181 : vector<16x32xf32>
    %183 = vector.broadcast %163 : vector<1x32xf32> to vector<16x32xf32>
    %184 = arith.mulf %182, %183 : vector<16x32xf32>
    %185 = vector.broadcast %164 : vector<1x32xf32> to vector<16x32xf32>
    %186 = arith.addf %184, %185 : vector<16x32xf32>
    %c0_110 = arith.constant 0 : index
    %c0_111 = arith.constant 0 : index
    %187 = vector.load %arg25[%c0_110, %c0_111] : memref<32x128xf32, #tpu.memory_space<vmem>>, vector<32x128xf32>
    %cst_112 = arith.constant dense<0.000000e+00> : vector<16x128xf32>
    %188 = tpu.matmul %186, %187, %cst_112 {dimension_numbers = #tpu.dot_dimension_numbers<[1], [0], [0], [1], [0, 0, 1, 1], [], []>} : vector<16x32xf32>, vector<32x128xf32>, vector<16x128xf32> -> vector<16x128xf32>
    %c0_113 = arith.constant 0 : index
    %c0_114 = arith.constant 0 : index
    %189 = vector.load %arg26[%c0_113, %c0_114] : memref<1x128xf32, #tpu.memory_space<vmem>>, vector<1x128xf32>
    %190 = vector.broadcast %189 : vector<1x128xf32> to vector<16x128xf32>
    %191 = arith.addf %188, %190 : vector<16x128xf32>
    %c0_115 = arith.constant 0 : index
    %c0_116 = arith.constant 0 : index
    %192 = vector.load %arg33[%c0_115, %c0_116] : memref<16x128xf32, #tpu.memory_space<vmem>>, vector<16x128xf32>
    tpu.vector_store %arg33[%c0_115, %c0_116], %191 {strides = array<i32>} : memref<16x128xf32, #tpu.memory_space<vmem>>, vector<16x128xf32>,
    return
  }
}

</mosaic_0001>

<llo_original>
// kernel: eq.3
$region0: #{eq.3}
  %s0 = inlined_call_operand.vmem [shape: s32[2,8], index: 0, kind: input, shape index: {}]
  %s1 = inlined_call_operand.vmem [shape: s32[16], index: 1, kind: output, shape index: {}]
  $region1: #{eq.3} parent=0
    #allocation0 [shape = 'u8[4096]{0}', space=vmem, size = 0x1000, scoped, tag = 'scoped mem for output reshape']
    #allocation1 [shape = 'u8[4096]{0}', space=vmem, size = 0x1000, scoped, tag = 'scoped mem for input reshape']
    %s3 = ssub.s32 4, 1
    %v4 = vld [vmem:[%s0] sm:%s3]
    %5 = vst [vmem:[#allocation1] sm:%s3] %v4
    %v6 = vld [vmem:[#allocation1] sm:$0x1]
    %vm7 = vcmask 64512
    %8 = vst.msk [vmem:[#allocation0] sm:$0x1] %vm7, %v6
    %s9 = scalar_lea.vmem [#allocation1], 1
    %v10 = vld [vmem:[%s9] sm:$0x1]
    %11 = vrot.lane.b32.xlu0 %v10, 8
    %v12 = vpop.permute.xlu0 %11
    %vm13 = vcmask 130112
    %14 = vst.msk [vmem:[#allocation0] sm:$0x1] %vm13, %v12
    %s16 = ssub.s32 2, 1
    %v17 = vld [vmem:[#allocation0] sm:%s16]
    %s19 = ssub.s32 2, 1
    %20 = vst [vmem:[%s1] sm:%s19] %v17

// kernel: htr_seq2seq_forward.1
$region0: #{htr_seq2seq_forward.1}
  #allocation0 [shape = 'u32[]', space=smem, size = 0x4, offset = 0x4, fixed_abs, tag = 'smem constant byte address 0x4 - core index']
  #allocation1 [shape = 'u32[72,128]{1,0:T(1,128)}', space=vmem, size = 0x9000, scoped, tag = 'internal scratch']
  %s0 = inlined_call_operand.smem [shape: u32[36], index: -1, kind: input, shape index: {}]
  %s1 = sld [smem:[%s0]]
  %s2 = scalar_lea.smem %s0, 1
  %s3 = sld [smem:[%s2]]
  %s4 = scalar_lea.smem %s0, 2
  %s5 = sld [smem:[%s4]]
  %s6 = scalar_lea.smem %s0, 3
  %s7 = sld [smem:[%s6]]
  %s8 = scalar_lea.smem %s0, 4
  %s9 = sld [smem:[%s8]]
  %s10 = scalar_lea.smem %s0, 5
  %s11 = sld [smem:[%s10]]
  %s12 = scalar_lea.smem %s0, 6
  %s13 = sld [smem:[%s12]]
  %s14 = scalar_lea.smem %s0, 7
  %s15 = sld [smem:[%s14]]
  %s16 = scalar_lea.smem %s0, 8
  %s17 = sld [smem:[%s16]]
  %s18 = scalar_lea.smem %s0, 9
  %s19 = sld [smem:[%s18]]
  %s20 = scalar_lea.smem %s0, 10
  %s21 = sld [smem:[%s20]]
  %s22 = scalar_lea.smem %s0, 11
  %s23 = sld [smem:[%s22]]
  %s24 = scalar_lea.smem %s0, 12
  %s25 = sld [smem:[%s24]]
  %s26 = scalar_lea.smem %s0, 13
  %s27 = sld [smem:[%s26]]
  %s28 = scalar_lea.smem %s0, 14
  %s29 = sld [smem:[%s28]]
  %s30 = scalar_lea.smem %s0, 15
  %s31 = sld [smem:[%s30]]
  %s32 = scalar_lea.smem %s0, 16
  %s33 = sld [smem:[%s32]]
  %s34 = scalar_lea.smem %s0, 17
  %s35 = sld [smem:[%s34]]
  %s36 = scalar_lea.smem %s0, 18
  %s37 = sld [smem:[%s36]]
  %s38 = scalar_lea.smem %s0, 19
  %s39 = sld [smem:[%s38]]
  %s40 = scalar_lea.smem %s0, 20
  %s41 = sld [smem:[%s40]]
  %s42 = scalar_lea.smem %s0, 21
  %s43 = sld [smem:[%s42]]
  %s44 = scalar_lea.smem %s0, 22
  %s45 = sld [smem:[%s44]]
  %s46 = scalar_lea.smem %s0, 23
  %s47 = sld [smem:[%s46]]
  %s48 = scalar_lea.smem %s0, 24
  %s49 = sld [smem:[%s48]]
  %s50 = scalar_lea.smem %s0, 25
  %s51 = sld [smem:[%s50]]
  %s52 = scalar_lea.smem %s0, 26
  %s53 = sld [smem:[%s52]]
  %s54 = scalar_lea.smem %s0, 27
  %s55 = sld [smem:[%s54]]
  %s56 = scalar_lea.smem %s0, 28
  %s57 = sld [smem:[%s56]]
  %s58 = scalar_lea.smem %s0, 29
  %s59 = sld [smem:[%s58]]
  %s60 = scalar_lea.smem %s0, 30
  %s61 = sld [smem:[%s60]]
  %s62 = scalar_lea.smem %s0, 31
  %s63 = sld [smem:[%s62]]
  %s64 = scalar_lea.smem %s0, 32
  %s65 = sld [smem:[%s64]]
  %s66 = scalar_lea.smem %s0, 33
  %s67 = sld [smem:[%s66]]
  %s68 = scalar_lea.smem %s0, 34
  %s69 = sld [smem:[%s68]]
  %s70 = scalar_lea.smem %s0, 35
  %s71 = sld [smem:[%s70]]
  %72 = xla_tuple %s67, %s69, %s71
  %s73 = sld [smem:[#allocation0]]
  $region158: #{htr_seq2seq_forward.1} parent=0
    _
  %s75 = ssub.s32 1, %s73
  %s76 = scalar_select 0, %s75, %s73
  $region1: #{htr_seq2seq_forward.1} parent=0
    #allocation2 [shape = 'u8[8192]{0}', space=vmem, size = 0x2000, scoped, tag = 'output window, operand 1, single buffered']
    #allocation3 [shape = 's32[1]{0}', space=sflag, size = 0x4, scoped, tag = 'scoped memory for htr_seq2seq_forward.1']
    #allocation4 [shape = 'u8[8192]{0}', space=vmem, size = 0x2000, scoped, tag = 'output window, operand 2, single buffered']
    #allocation5 [shape = 's32[1]{0}', space=sflag, size = 0x4, scoped, tag = 'scoped memory for htr_seq2seq_forward.1']
    %77 = vsyncpa [#allocation3], 0
    %78 = vsyncpa [#allocation5], 0
    // Predicated region
    $region2: #{htr_seq2seq_forward.1} parent=1 // pred_check
      _
    $region3: #{htr_seq2seq_forward.1} parent=1 // pred_check_branch
      %80 = sbr.rel (0) target = $region5
    $region4: #{htr_seq2seq_forward.1} parent=1 // pred_region
      _
    $region5: #{htr_seq2seq_forward.1} parent=1 // pred_fallthru
      _
    // Predicated region
    $region6: #{htr_seq2seq_forward.1} parent=1 // pred_check
      _
    $region7: #{htr_seq2seq_forward.1} parent=1 // pred_check_branch
      %82 = sbr.rel (0) target = $region9
    $region8: #{htr_seq2seq_forward.1} parent=1 // pred_region
      _
    $region9: #{htr_seq2seq_forward.1} parent=1 // pred_fallthru
      _
    // Predicated region
    $region10: #{htr_seq2seq_forward.1} parent=1 // pred_check
      _
    $region11: #{htr_seq2seq_forward.1} parent=1 // pred_check_branch
      %84 = sbr.rel (0) target = $region13
    $region12: #{htr_seq2seq_forward.1} parent=1 // pred_region
      _
    $region13: #{htr_seq2seq_forward.1} parent=1 // pred_fallthru
      _
    // Predicated region
    $region14: #{htr_seq2seq_forward.1} parent=1 // pred_check
      _
    $region15: #{htr_seq2seq_forward.1} parent=1 // pred_check_branch
      %86 = sbr.rel (0) target = $region17
    $region16: #{htr_seq2seq_forward.1} parent=1 // pred_region
      _
    $region17: #{htr_seq2seq_forward.1} parent=1 // pred_fallthru
      _
    // Predicated region
    $region18: #{htr_seq2seq_forward.1} parent=1 // pred_check
      _
    $region19: #{htr_seq2seq_forward.1} parent=1 // pred_check_branch
      %88 = sbr.rel (0) target = $region21
    $region20: #{htr_seq2seq_forward.1} parent=1 // pred_region
      _
    $region21: #{htr_seq2seq_forward.1} parent=1 // pred_fallthru
      _
    // Predicated region
    $region22: #{htr_seq2seq_forward.1} parent=1 // pred_check
      _
    $region23: #{htr_seq2seq_forward.1} parent=1 // pred_check_branch
      %90 = sbr.rel (0) target = $region25
    $region24: #{htr_seq2seq_forward.1} parent=1 // pred_region
      _
    $region25: #{htr_seq2seq_forward.1} parent=1 // pred_fallthru
      _
    // Predicated region
    $region26: #{htr_seq2seq_forward.1} parent=1 // pred_check
      _
    $region27: #{htr_seq2seq_forward.1} parent=1 // pred_check_branch
      %92 = sbr.rel (0) target = $region29
    $region28: #{htr_seq2seq_forward.1} parent=1 // pred_region
      _
    $region29: #{htr_seq2seq_forward.1} parent=1 // pred_fallthru
      _
    // Predicated region
    $region30: #{htr_seq2seq_forward.1} parent=1 // pred_check
      _
    $region31: #{htr_seq2seq_forward.1} parent=1 // pred_check_branch
      %94 = sbr.rel (0) target = $region33
    $region32: #{htr_seq2seq_forward.1} parent=1 // pred_region
      _
    $region33: #{htr_seq2seq_forward.1} parent=1 // pred_fallthru
      _
    // Predicated region
    $region34: #{htr_seq2seq_forward.1} parent=1 // pred_check
      _
    $region35: #{htr_seq2seq_forward.1} parent=1 // pred_check_branch
      %96 = sbr.rel (0) target = $region37
    $region36: #{htr_seq2seq_forward.1} parent=1 // pred_region
      _
    $region37: #{htr_seq2seq_forward.1} parent=1 // pred_fallthru
      _
    // Predicated region
    $region38: #{htr_seq2seq_forward.1} parent=1 // pred_check
      _
    $region39: #{htr_seq2seq_forward.1} parent=1 // pred_check_branch
      %98 = sbr.rel (0) target = $region41
    $region40: #{htr_seq2seq_forward.1} parent=1 // pred_region
      _
    $region41: #{htr_seq2seq_forward.1} parent=1 // pred_fallthru
      _
    // Predicated region
    $region42: #{htr_seq2seq_forward.1} parent=1 // pred_check
      _
    $region43: #{htr_seq2seq_forward.1} parent=1 // pred_check_branch
      %100 = sbr.rel (0) target = $region45
    $region44: #{htr_seq2seq_forward.1} parent=1 // pred_region
      _
    $region45: #{htr_seq2seq_forward.1} parent=1 // pred_fallthru
      _
    // Predicated region
    $region46: #{htr_seq2seq_forward.1} parent=1 // pred_check
      _
    $region47: #{htr_seq2seq_forward.1} parent=1 // pred_check_branch
      %102 = sbr.rel (0) target = $region49
    $region48: #{htr_seq2seq_forward.1} parent=1 // pred_region
      _
    $region49: #{htr_seq2seq_forward.1} parent=1 // pred_fallthru
      _
    // Predicated region
    $region50: #{htr_seq2seq_forward.1} parent=1 // pred_check
      _
    $region51: #{htr_seq2seq_forward.1} parent=1 // pred_check_branch
      %104 = sbr.rel (0) target = $region53
    $region52: #{htr_seq2seq_forward.1} parent=1 // pred_region
      _
    $region53: #{htr_seq2seq_forward.1} parent=1 // pred_fallthru
      _
    // Predicated region
    $region54: #{htr_seq2seq_forward.1} parent=1 // pred_check
      _
    $region55: #{htr_seq2seq_forward.1} parent=1 // pred_check_branch
      %106 = sbr.rel (0) target = $region57
    $region56: #{htr_seq2seq_forward.1} parent=1 // pred_region
      _
    $region57: #{htr_seq2seq_forward.1} parent=1 // pred_fallthru
      _
    // Predicated region
    $region58: #{htr_seq2seq_forward.1} parent=1 // pred_check
      _
    $region59: #{htr_seq2seq_forward.1} parent=1 // pred_check_branch
      %108 = sbr.rel (0) target = $region61
    $region60: #{htr_seq2seq_forward.1} parent=1 // pred_region
      _
    $region61: #{htr_seq2seq_forward.1} parent=1 // pred_fallthru
      _
    // Predicated region
    $region62: #{htr_seq2seq_forward.1} parent=1 // pred_check
      _
    $region63: #{htr_seq2seq_forward.1} parent=1 // pred_check_branch
      %110 = sbr.rel (0) target = $region65
    $region64: #{htr_seq2seq_forward.1} parent=1 // pred_region
      _
    $region65: #{htr_seq2seq_forward.1} parent=1 // pred_fallthru
      _
    // Predicated region
    $region66: #{htr_seq2seq_forward.1} parent=1 // pred_check
      _
    $region67: #{htr_seq2seq_forward.1} parent=1 // pred_check_branch
      %112 = sbr.rel (0) target = $region69
    $region68: #{htr_seq2seq_forward.1} parent=1 // pred_region
      _
    $region69: #{htr_seq2seq_forward.1} parent=1 // pred_fallthru
      _
    // Predicated region
    $region70: #{htr_seq2seq_forward.1} parent=1 // pred_check
      _
    $region71: #{htr_seq2seq_forward.1} parent=1 // pred_check_branch
      %114 = sbr.rel (0) target = $region73
    $region72: #{htr_seq2seq_forward.1} parent=1 // pred_region
      _
    $region73: #{htr_seq2seq_forward.1} parent=1 // pred_fallthru
      _
    // Predicated region
    $region74: #{htr_seq2seq_forward.1} parent=1 // pred_check
      _
    $region75: #{htr_seq2seq_forward.1} parent=1 // pred_check_branch
      %116 = sbr.rel (0) target = $region77
    $region76: #{htr_seq2seq_forward.1} parent=1 // pred_region
      _
    $region77: #{htr_seq2seq_forward.1} parent=1 // pred_fallthru
      _
    // Predicated region
    $region78: #{htr_seq2seq_forward.1} parent=1 // pred_check
      _
    $region79: #{htr_seq2seq_forward.1} parent=1 // pred_check_branch
      %118 = sbr.rel (0) target = $region81
    $region80: #{htr_seq2seq_forward.1} parent=1 // pred_region
      _
    $region81: #{htr_seq2seq_forward.1} parent=1 // pred_fallthru
      _
    // Predicated region
    $region82: #{htr_seq2seq_forward.1} parent=1 // pred_check
      _
    $region83: #{htr_seq2seq_forward.1} parent=1 // pred_check_branch
      %120 = sbr.rel (0) target = $region85
    $region84: #{htr_seq2seq_forward.1} parent=1 // pred_region
      _
    $region85: #{htr_seq2seq_forward.1} parent=1 // pred_fallthru
      _
    // Predicated region
    $region86: #{htr_seq2seq_forward.1} parent=1 // pred_check
      _
    $region87: #{htr_seq2seq_forward.1} parent=1 // pred_check_branch
      %122 = sbr.rel (0) target = $region89
    $region88: #{htr_seq2seq_forward.1} parent=1 // pred_region
      _
    $region89: #{htr_seq2seq_forward.1} parent=1 // pred_fallthru
      _
    // Predicated region
    $region90: #{htr_seq2seq_forward.1} parent=1 // pred_check
      _
    $region91: #{htr_seq2seq_forward.1} parent=1 // pred_check_branch
      %124 = sbr.rel (0) target = $region93
    $region92: #{htr_seq2seq_forward.1} parent=1 // pred_region
      _
    $region93: #{htr_seq2seq_forward.1} parent=1 // pred_fallthru
      _
    // Predicated region
    $region94: #{htr_seq2seq_forward.1} parent=1 // pred_check
      _
    $region95: #{htr_seq2seq_forward.1} parent=1 // pred_check_branch
      %126 = sbr.rel (0) target = $region97
    $region96: #{htr_seq2seq_forward.1} parent=1 // pred_region
      _
    $region97: #{htr_seq2seq_forward.1} parent=1 // pred_fallthru
      _
    // Predicated region
    $region98: #{htr_seq2seq_forward.1} parent=1 // pred_check
      _
    $region99: #{htr_seq2seq_forward.1} parent=1 // pred_check_branch
      %128 = sbr.rel (0) target = $region101
    $region100: #{htr_seq2seq_forward.1} parent=1 // pred_region
      _
    $region101: #{htr_seq2seq_forward.1} parent=1 // pred_fallthru
      _
    // Predicated region
    $region102: #{htr_seq2seq_forward.1} parent=1 // pred_check
      _
    $region103: #{htr_seq2seq_forward.1} parent=1 // pred_check_branch
      %130 = sbr.rel (0) target = $region105
    $region104: #{htr_seq2seq_forward.1} parent=1 // pred_region
      _
    $region105: #{htr_seq2seq_forward.1} parent=1 // pred_fallthru
      _
    // Predicated region
    $region106: #{htr_seq2seq_forward.1} parent=1 // pred_check
      _
    $region107: #{htr_seq2seq_forward.1} parent=1 // pred_check_branch
      %132 = sbr.rel (0) target = $region109
    $region108: #{htr_seq2seq_forward.1} parent=1 // pred_region
      _
    $region109: #{htr_seq2seq_forward.1} parent=1 // pred_fallthru
      _
    // Predicated region
    $region110: #{htr_seq2seq_forward.1} parent=1 // pred_check
      _
    $region111: #{htr_seq2seq_forward.1} parent=1 // pred_check_branch
      %134 = sbr.rel (0) target = $region113
    $region112: #{htr_seq2seq_forward.1} parent=1 // pred_region
      _
    $region113: #{htr_seq2seq_forward.1} parent=1 // pred_fallthru
      _
    // Predicated region
    $region114: #{htr_seq2seq_forward.1} parent=1 // pred_check
      _
    $region115: #{htr_seq2seq_forward.1} parent=1 // pred_check_branch
      %136 = sbr.rel (0) target = $region117
    $region116: #{htr_seq2seq_forward.1} parent=1 // pred_region
      _
    $region117: #{htr_seq2seq_forward.1} parent=1 // pred_fallthru
      _
    // Predicated region
    $region118: #{htr_seq2seq_forward.1} parent=1 // pred_check
      _
    $region119: #{htr_seq2seq_forward.1} parent=1 // pred_check_branch
      %138 = sbr.rel (0) target = $region121
    $region120: #{htr_seq2seq_forward.1} parent=1 // pred_region
      _
    $region121: #{htr_seq2seq_forward.1} parent=1 // pred_fallthru
      _
    // Predicated region
    $region122: #{htr_seq2seq_forward.1} parent=1 // pred_check
      _
    $region123: #{htr_seq2seq_forward.1} parent=1 // pred_check_branch
      %140 = sbr.rel (0) target = $region125
    $region124: #{htr_seq2seq_forward.1} parent=1 // pred_region
      _
    $region125: #{htr_seq2seq_forward.1} parent=1 // pred_fallthru
      _
    // Predicated region
    $region126: #{htr_seq2seq_forward.1} parent=1 // pred_check
      _
    $region127: #{htr_seq2seq_forward.1} parent=1 // pred_check_branch
      %142 = sbr.rel (0) target = $region129
    $region128: #{htr_seq2seq_forward.1} parent=1 // pred_region
      _
    $region129: #{htr_seq2seq_forward.1} parent=1 // pred_fallthru
      _
    // Predicated region
    $region130: #{htr_seq2seq_forward.1} parent=1 // pred_check
      _
    $region131: #{htr_seq2seq_forward.1} parent=1 // pred_check_branch
      %144 = sbr.rel (0) target = $region133
    $region132: #{htr_seq2seq_forward.1} parent=1 // pred_region
      _
    $region133: #{htr_seq2seq_forward.1} parent=1 // pred_fallthru
      _
    %v145 = vld [vmem:[%s1] sm:$0xff]
    %v146 = vld [vmem:[%s1 + $0x8] sm:$0xff]
    %v147 = vld [vmem:[%s1 + $0x10] sm:$0xff]
    %v148 = vld [vmem:[%s1 + $0x18] sm:$0xff]
    %v149 = vld [vmem:[%s1 + $0x20] sm:$0xff]
    %v150 = vld [vmem:[%s1 + $0x28] sm:$0xff]
    %v151 = vld [vmem:[%s1 + $0x30] sm:$0xff]
    %v152 = vld [vmem:[%s1 + $0x38] sm:$0xff]
    %v153 = vld [vmem:[%s1 + $0x40] sm:$0xff]
    %v154 = vld [vmem:[%s1 + $0x48] sm:$0xff]
    %v155 = vld [vmem:[%s1 + $0x50] sm:$0xff]
    %v156 = vld [vmem:[%s1 + $0x58] sm:$0xff]
    %v157 = vld [vmem:[%s1 + $0x60] sm:$0xff]
    %v158 = vld [vmem:[%s1 + $0x68] sm:$0xff]
    %v159 = vld [vmem:[%s1 + $0x70] sm:$0xff]
    %v160 = vld [vmem:[%s1 + $0x78] sm:$0xff]
    %v161 = vld [vmem:[%s1 + $0x80] sm:$0xff]
    %v162 = vld [vmem:[%s1 + $0x88] sm:$0xff]
    %v163 = vld [vmem:[%s1 + $0x90] sm:$0xff]
    %v164 = vld [vmem:[%s1 + $0x98] sm:$0xff]
    %v165 = vld [vmem:[%s1 + $0xa0] sm:$0xff]
    %v166 = vld [vmem:[%s1 + $0xa8] sm:$0xff]
    %v167 = vld [vmem:[%s1 + $0xb0] sm:$0xff]
    %v168 = vld [vmem:[%s1 + $0xb8] sm:$0xff]
    %v169 = vld [vmem:[%s1 + $0xc0] sm:$0xff]
    %v170 = vld [vmem:[%s1 + $0xc8] sm:$0xff]
    %v171 = vld [vmem:[%s1 + $0xd0] sm:$0xff]
    %v172 = vld [vmem:[%s1 + $0xd8] sm:$0xff]
    %v173 = vld [vmem:[%s1 + $0xe0] sm:$0xff]
    %v174 = vld [vmem:[%s1 + $0xe8] sm:$0xff]
    %v175 = vld [vmem:[%s1 + $0xf0] sm:$0xff]
    %v176 = vld [vmem:[%s1 + $0xf8] sm:$0xff]
    %v177 = vld [vmem:[%s1 + $0x100] sm:$0xff]
    %v178 = vld [vmem:[%s1 + $0x108] sm:$0xff]
    %v179 = vld [vmem:[%s1 + $0x110] sm:$0xff]
    %v180 = vld [vmem:[%s1 + $0x118] sm:$0xff]
    %v181 = vld [vmem:[%s1 + $0x120] sm:$0xff]
    %v182 = vld [vmem:[%s1 + $0x128] sm:$0xff]
    %v183 = vld [vmem:[%s1 + $0x130] sm:$0xff]
    %v184 = vld [vmem:[%s1 + $0x138] sm:$0xff]
    %v185 = vld [vmem:[%s1 + $0x140] sm:$0xff]
    %v186 = vld [vmem:[%s1 + $0x148] sm:$0xff]
    %v187 = vld [vmem:[%s1 + $0x150] sm:$0xff]
    %v188 = vld [vmem:[%s1 + $0x158] sm:$0xff]
    %v189 = vld [vmem:[%s1 + $0x160] sm:$0xff]
    %v190 = vld [vmem:[%s1 + $0x168] sm:$0xff]
    %v191 = vld [vmem:[%s1 + $0x170] sm:$0xff]
    %v192 = vld [vmem:[%s1 + $0x178] sm:$0xff]
    %v193 = vld [vmem:[%s1 + $0x180] sm:$0xff]
    %v194 = vld [vmem:[%s1 + $0x188] sm:$0xff]
    %v195 = vld [vmem:[%s1 + $0x190] sm:$0xff]
    %v196 = vld [vmem:[%s1 + $0x198] sm:$0xff]
    %v197 = vld [vmem:[%s1 + $0x1a0] sm:$0xff]
    %v198 = vld [vmem:[%s1 + $0x1a8] sm:$0xff]
    %v199 = vld [vmem:[%s1 + $0x1b0] sm:$0xff]
    %v200 = vld [vmem:[%s1 + $0x1b8] sm:$0xff]
    %v201 = vld [vmem:[%s1 + $0x1c0] sm:$0xff]
    %v202 = vld [vmem:[%s1 + $0x1c8] sm:$0xff]
    %v203 = vld [vmem:[%s1 + $0x1d0] sm:$0xff]
    %v204 = vld [vmem:[%s1 + $0x1d8] sm:$0xff]
    %v205 = vld [vmem:[%s1 + $0x1e0] sm:$0xff]
    %v206 = vld [vmem:[%s1 + $0x1e8] sm:$0xff]
    %v207 = vld [vmem:[%s1 + $0x1f0] sm:$0xff]
    %v208 = vld [vmem:[%s1 + $0x1f8] sm:$0xff]
    %v209 = vld [vmem:[%s13] sm:$0xff]
    %v210 = vld [vmem:[%s13 + $0x8] sm:$0xff]
    %v211 = vld [vmem:[%s13 + $0x10] sm:$0xff]
    %v212 = vld [vmem:[%s13 + $0x18] sm:$0xff]
    %v213 = vld [vmem:[%s13 + $0x20] sm:$0xf]
    %v214 = vld [vmem:[%s15] sm:$0x1]
    %v216 = vperm.slane %v214, 0
    %vm218 = vcmask 293888
    %v220 = vsel %vm218, %v145, 0
    %v223 = vsel %vm218, %v146, 0
    %v226 = vsel %vm218, %v147, 0
    %v229 = vsel %vm218, %v148, 0
    %v232 = vsel %vm218, %v149, 0
    %v235 = vsel %vm218, %v150, 0
    %v238 = vsel %vm218, %v151, 0
    %v241 = vsel %vm218, %v152, 0
    %v244 = vsel %vm218, %v153, 0
    %v247 = vsel %vm218, %v154, 0
    %v250 = vsel %vm218, %v155, 0
    %v253 = vsel %vm218, %v156, 0
    %v256 = vsel %vm218, %v157, 0
    %v259 = vsel %vm218, %v158, 0
    %v262 = vsel %vm218, %v159, 0
    %v265 = vsel %vm218, %v160, 0
    %v268 = vsel %vm218, %v161, 0
    %v271 = vsel %vm218, %v162, 0
    %v274 = vsel %vm218, %v163, 0
    %v277 = vsel %vm218, %v164, 0
    %v280 = vsel %vm218, %v165, 0
    %v283 = vsel %vm218, %v166, 0
    %v286 = vsel %vm218, %v167, 0
    %v289 = vsel %vm218, %v168, 0
    %v292 = vsel %vm218, %v169, 0
    %v295 = vsel %vm218, %v170, 0
    %v298 = vsel %vm218, %v171, 0
    %v301 = vsel %vm218, %v172, 0
    %v304 = vsel %vm218, %v173, 0
    %v307 = vsel %vm218, %v174, 0
    %v310 = vsel %vm218, %v175, 0
    %v313 = vsel %vm218, %v176, 0
    %v316 = vsel %vm218, %v177, 0
    %v319 = vsel %vm218, %v178, 0
    %v322 = vsel %vm218, %v179, 0
    %v325 = vsel %vm218, %v180, 0
    %v328 = vsel %vm218, %v181, 0
    %v331 = vsel %vm218, %v182, 0
    %v334 = vsel %vm218, %v183, 0
    %v337 = vsel %vm218, %v184, 0
    %v340 = vsel %vm218, %v185, 0
    %v343 = vsel %vm218, %v186, 0
    %v346 = vsel %vm218, %v187, 0
    %v349 = vsel %vm218, %v188, 0
    %v352 = vsel %vm218, %v189, 0
    %v355 = vsel %vm218, %v190, 0
    %v358 = vsel %vm218, %v191, 0
    %v361 = vsel %vm218, %v192, 0
    %v364 = vsel %vm218, %v193, 0
    %v367 = vsel %vm218, %v194, 0
    %v370 = vsel %vm218, %v195, 0
    %v373 = vsel %vm218, %v196, 0
    %v376 = vsel %vm218, %v197, 0
    %v379 = vsel %vm218, %v198, 0
    %v382 = vsel %vm218, %v199, 0
    %v385 = vsel %vm218, %v200, 0
    %v388 = vsel %vm218, %v201, 0
    %v391 = vsel %vm218, %v202, 0
    %v394 = vsel %vm218, %v203, 0
    %v397 = vsel %vm218, %v204, 0
    %v400 = vsel %vm218, %v205, 0
    %v403 = vsel %vm218, %v206, 0
    %v406 = vsel %vm218, %v207, 0
    %v409 = vsel %vm218, %v208, 0
    %vm411 = vcmask 1043456
    %v413 = vsel %vm411, %v213, 0
    %415 = vmatpush.msra.mxu0 0.0
    %416 = vmatpush.msra.mxu0 0.0
    %417 = vmatpush.msra.mxu0 0.0
    %418 = vmatpush.msra.mxu0 0.0
    %419 = vmatpush.msra.mxu0 0.0
    %420 = vmatpush.msra.mxu0 0.0
    %421 = vmatpush.msra.mxu0 0.0
    %422 = vmatpush.msra.mxu0 0.0
    %423 = vmatpush.msra.mxu0 0.0
    %424 = vmatpush.msra.mxu0 0.0
    %425 = vmatpush.msra.mxu0 0.0
    %426 = vmatpush.msra.mxu0 %v413
    %427 = vmatpush.msra.mxu0 %v212
    %428 = vmatpush.msra.mxu0 %v211
    %429 = vmatpush.msra.mxu0 %v210
    %430 = vmatpush.msra.mxu0 %v209
    %431 = vmatmul.f32.gmra.mxu0 %v220
    %v432 = vpop.f32.mrf.mxu0
    %v433 = vadd.f32 %v216, %v432
    %434 = vmatmul.f32.gmra.mxu0 %v223
    %v435 = vpop.f32.mrf.mxu0
    %v436 = vadd.f32 %v216, %v435
    %437 = vmatmul.f32.gmra.mxu0 %v226
    %v438 = vpop.f32.mrf.mxu0
    %v439 = vadd.f32 %v216, %v438
    %440 = vmatmul.f32.gmra.mxu0 %v229
    %v441 = vpop.f32.mrf.mxu0
    %v442 = vadd.f32 %v216, %v441
    %443 = vmatmul.f32.gmra.mxu0 %v232
    %v444 = vpop.f32.mrf.mxu0
    %v445 = vadd.f32 %v216, %v444
    %446 = vmatmul.f32.gmra.mxu0 %v235
    %v447 = vpop.f32.mrf.mxu0
    %v448 = vadd.f32 %v216, %v447
    %449 = vmatmul.f32.gmra.mxu0 %v238
    %v450 = vpop.f32.mrf.mxu0
    %v451 = vadd.f32 %v216, %v450
    %452 = vmatmul.f32.gmra.mxu0 %v241
    %v453 = vpop.f32.mrf.mxu0
    %v454 = vadd.f32 %v216, %v453
    %455 = vmatmul.f32.gmra.mxu0 %v244
    %v456 = vpop.f32.mrf.mxu0
    %v457 = vadd.f32 %v216, %v456
    %458 = vmatmul.f32.gmra.mxu0 %v247
    %v459 = vpop.f32.mrf.mxu0
    %v460 = vadd.f32 %v216, %v459
    %461 = vmatmul.f32.gmra.mxu0 %v250
    %v462 = vpop.f32.mrf.mxu0
    %v463 = vadd.f32 %v216, %v462
    %464 = vmatmul.f32.gmra.mxu0 %v253
    %v465 = vpop.f32.mrf.mxu0
    %v466 = vadd.f32 %v216, %v465
    %467 = vmatmul.f32.gmra.mxu0 %v256
    %v468 = vpop.f32.mrf.mxu0
    %v469 = vadd.f32 %v216, %v468
    %470 = vmatmul.f32.gmra.mxu0 %v259
    %v471 = vpop.f32.mrf.mxu0
    %v472 = vadd.f32 %v216, %v471
    %473 = vmatmul.f32.gmra.mxu0 %v262
    %v474 = vpop.f32.mrf.mxu0
    %v475 = vadd.f32 %v216, %v474
    %476 = vmatmul.f32.gmra.mxu0 %v265
    %v477 = vpop.f32.mrf.mxu0
    %v478 = vadd.f32 %v216, %v477
    %479 = vmatmul.f32.gmra.mxu0 %v268
    %v480 = vpop.f32.mrf.mxu0
    %v481 = vadd.f32 %v216, %v480
    %482 = vmatmul.f32.gmra.mxu0 %v271
    %v483 = vpop.f32.mrf.mxu0
    %v484 = vadd.f32 %v216, %v483
    %485 = vmatmul.f32.gmra.mxu0 %v274
    %v486 = vpop.f32.mrf.mxu0
    %v487 = vadd.f32 %v216, %v486
    %488 = vmatmul.f32.gmra.mxu0 %v277
    %v489 = vpop.f32.mrf.mxu0
    %v490 = vadd.f32 %v216, %v489
    %491 = vmatmul.f32.gmra.mxu0 %v280
    %v492 = vpop.f32.mrf.mxu0
    %v493 = vadd.f32 %v216, %v492
    %494 = vmatmul.f32.gmra.mxu0 %v283
    %v495 = vpop.f32.mrf.mxu0
    %v496 = vadd.f32 %v216, %v495
    %497 = vmatmul.f32.gmra.mxu0 %v286
    %v498 = vpop.f32.mrf.mxu0
    %v499 = vadd.f32 %v216, %v498
    %500 = vmatmul.f32.gmra.mxu0 %v289
    %v501 = vpop.f32.mrf.mxu0
    %v502 = vadd.f32 %v216, %v501
    %503 = vmatmul.f32.gmra.mxu0 %v292
    %v504 = vpop.f32.mrf.mxu0
    %v505 = vadd.f32 %v216, %v504
    %506 = vmatmul.f32.gmra.mxu0 %v295
    %v507 = vpop.f32.mrf.mxu0
    %v508 = vadd.f32 %v216, %v507
    %509 = vmatmul.f32.gmra.mxu0 %v298
    %v510 = vpop.f32.mrf.mxu0
    %v511 = vadd.f32 %v216, %v510
    %512 = vmatmul.f32.gmra.mxu0 %v301
    %v513 = vpop.f32.mrf.mxu0
    %v514 = vadd.f32 %v216, %v513
    %515 = vmatmul.f32.gmra.mxu0 %v304
    %v516 = vpop.f32.mrf.mxu0
    %v517 = vadd.f32 %v216, %v516
    %518 = vmatmul.f32.gmra.mxu0 %v307
    %v519 = vpop.f32.mrf.mxu0
    %v520 = vadd.f32 %v216, %v519
    %521 = vmatmul.f32.gmra.mxu0 %v310
    %v522 = vpop.f32.mrf.mxu0
    %v523 = vadd.f32 %v216, %v522
    %524 = vmatmul.f32.gmra.mxu0 %v313
    %v525 = vpop.f32.mrf.mxu0
    %v526 = vadd.f32 %v216, %v525
    %527 = vmatmul.f32.gmra.mxu0 %v316
    %v528 = vpop.f32.mrf.mxu0
    %v529 = vadd.f32 %v216, %v528
    %530 = vmatmul.f32.gmra.mxu0 %v319
    %v531 = vpop.f32.mrf.mxu0
    %v532 = vadd.f32 %v216, %v531
    %533 = vmatmul.f32.gmra.mxu0 %v322
    %v534 = vpop.f32.mrf.mxu0
    %v535 = vadd.f32 %v216, %v534
    %536 = vmatmul.f32.gmra.mxu0 %v325
    %v537 = vpop.f32.mrf.mxu0
    %v538 = vadd.f32 %v216, %v537
    %539 = vmatmul.f32.gmra.mxu0 %v328
    %v540 = vpop.f32.mrf.mxu0
    %v541 = vadd.f32 %v216, %v540
    %542 = vmatmul.f32.gmra.mxu0 %v331
    %v543 = vpop.f32.mrf.mxu0
    %v544 = vadd.f32 %v216, %v543
    %545 = vmatmul.f32.gmra.mxu0 %v334
    %v546 = vpop.f32.mrf.mxu0
    %v547 = vadd.f32 %v216, %v546
    %548 = vmatmul.f32.gmra.mxu0 %v337
    %v549 = vpop.f32.mrf.mxu0
    %v550 = vadd.f32 %v216, %v549
    %551 = vmatmul.f32.gmra.mxu0 %v340
    %v552 = vpop.f32.mrf.mxu0
    %v553 = vadd.f32 %v216, %v552
    %554 = vmatmul.f32.gmra.mxu0 %v343
    %v555 = vpop.f32.mrf.mxu0
    %v556 = vadd.f32 %v216, %v555
    %557 = vmatmul.f32.gmra.mxu0 %v346
    %v558 = vpop.f32.mrf.mxu0
    %v559 = vadd.f32 %v216, %v558
    %560 = vmatmul.f32.gmra.mxu0 %v349
    %v561 = vpop.f32.mrf.mxu0
    %v562 = vadd.f32 %v216, %v561
    %563 = vmatmul.f32.gmra.mxu0 %v352
    %v564 = vpop.f32.mrf.mxu0
    %v565 = vadd.f32 %v216, %v564
    %566 = vmatmul.f32.gmra.mxu0 %v355
    %v567 = vpop.f32.mrf.mxu0
    %v568 = vadd.f32 %v216, %v567
    %569 = vmatmul.f32.gmra.mxu0 %v358
    %v570 = vpop.f32.mrf.mxu0
    %v571 = vadd.f32 %v216, %v570
    %572 = vmatmul.f32.gmra.mxu0 %v361
    %v573 = vpop.f32.mrf.mxu0
    %v574 = vadd.f32 %v216, %v573
    %575 = vmatmul.f32.gmra.mxu0 %v364
    %v576 = vpop.f32.mrf.mxu0
    %v577 = vadd.f32 %v216, %v576
    %578 = vmatmul.f32.gmra.mxu0 %v367
    %v579 = vpop.f32.mrf.mxu0
    %v580 = vadd.f32 %v216, %v579
    %581 = vmatmul.f32.gmra.mxu0 %v370
    %v582 = vpop.f32.mrf.mxu0
    %v583 = vadd.f32 %v216, %v582
    %584 = vmatmul.f32.gmra.mxu0 %v373
    %v585 = vpop.f32.mrf.mxu0
    %v586 = vadd.f32 %v216, %v585
    %587 = vmatmul.f32.gmra.mxu0 %v376
    %v588 = vpop.f32.mrf.mxu0
    %v589 = vadd.f32 %v216, %v588
    %590 = vmatmul.f32.gmra.mxu0 %v379
    %v591 = vpop.f32.mrf.mxu0
    %v592 = vadd.f32 %v216, %v591
    %593 = vmatmul.f32.gmra.mxu0 %v382
    %v594 = vpop.f32.mrf.mxu0
    %v595 = vadd.f32 %v216, %v594
    %596 = vmatmul.f32.gmra.mxu0 %v385
    %v597 = vpop.f32.mrf.mxu0
    %v598 = vadd.f32 %v216, %v597
    %599 = vmatmul.f32.gmra.mxu0 %v388
    %v600 = vpop.f32.mrf.mxu0
    %v601 = vadd.f32 %v216, %v600
    %602 = vmatmul.f32.gmra.mxu0 %v391
    %v603 = vpop.f32.mrf.mxu0
    %v604 = vadd.f32 %v216, %v603
    %605 = vmatmul.f32.gmra.mxu0 %v394
    %v606 = vpop.f32.mrf.mxu0
    %v607 = vadd.f32 %v216, %v606
    %608 = vmatmul.f32.gmra.mxu0 %v397
    %v609 = vpop.f32.mrf.mxu0
    %v610 = vadd.f32 %v216, %v609
    %611 = vmatmul.f32.gmra.mxu0 %v400
    %v612 = vpop.f32.mrf.mxu0
    %v613 = vadd.f32 %v216, %v612
    %614 = vmatmul.f32.gmra.mxu0 %v403
    %v615 = vpop.f32.mrf.mxu0
    %v616 = vadd.f32 %v216, %v615
    %617 = vmatmul.f32.gmra.mxu0 %v406
    %v618 = vpop.f32.mrf.mxu0
    %v619 = vadd.f32 %v216, %v618
    %620 = vmatmul.f32.gmra.mxu0 %v409
    %v621 = vpop.f32.mrf.mxu0
    %v622 = vadd.f32 %v216, %v621
    %623 = vdwg.mxu0
    %v624 = vmax.f32 %v433, 0.0
    %v625 = vmax.f32 %v436, 0.0
    %v626 = vmax.f32 %v439, 0.0
    %v627 = vmax.f32 %v442, 0.0
    %v628 = vmax.f32 %v445, 0.0
    %v629 = vmax.f32 %v448, 0.0
    %v630 = vmax.f32 %v451, 0.0
    %v631 = vmax.f32 %v454, 0.0
    %v632 = vmax.f32 %v457, 0.0
    %v633 = vmax.f32 %v460, 0.0
    %v634 = vmax.f32 %v463, 0.0
    %v635 = vmax.f32 %v466, 0.0
    %v636 = vmax.f32 %v469, 0.0
    %v637 = vmax.f32 %v472, 0.0
    %v638 = vmax.f32 %v475, 0.0
    %v639 = vmax.f32 %v478, 0.0
    %v640 = vmax.f32 %v481, 0.0
    %v641 = vmax.f32 %v484, 0.0
    %v642 = vmax.f32 %v487, 0.0
    %v643 = vmax.f32 %v490, 0.0
    %v644 = vmax.f32 %v493, 0.0
    %v645 = vmax.f32 %v496, 0.0
    %v646 = vmax.f32 %v499, 0.0
    %v647 = vmax.f32 %v502, 0.0
    %v648 = vmax.f32 %v505, 0.0
    %v649 = vmax.f32 %v508, 0.0
    %v650 = vmax.f32 %v511, 0.0
    %v651 = vmax.f32 %v514, 0.0
    %v652 = vmax.f32 %v517, 0.0
    %v653 = vmax.f32 %v520, 0.0
    %v654 = vmax.f32 %v523, 0.0
    %v655 = vmax.f32 %v526, 0.0
    %v656 = vmax.f32 %v529, 0.0
    %v657 = vmax.f32 %v532, 0.0
    %v658 = vmax.f32 %v535, 0.0
    %v659 = vmax.f32 %v538, 0.0
    %v660 = vmax.f32 %v541, 0.0
    %v661 = vmax.f32 %v544, 0.0
    %v662 = vmax.f32 %v547, 0.0
    %v663 = vmax.f32 %v550, 0.0
    %v664 = vmax.f32 %v553, 0.0
    %v665 = vmax.f32 %v556, 0.0
    %v666 = vmax.f32 %v559, 0.0
    %v667 = vmax.f32 %v562, 0.0
    %v668 = vmax.f32 %v565, 0.0
    %v669 = vmax.f32 %v568, 0.0
    %v670 = vmax.f32 %v571, 0.0
    %v671 = vmax.f32 %v574, 0.0
    %v672 = vmax.f32 %v577, 0.0
    %v673 = vmax.f32 %v580, 0.0
    %v674 = vmax.f32 %v583, 0.0
    %v675 = vmax.f32 %v586, 0.0
    %v676 = vmax.f32 %v589, 0.0
    %v677 = vmax.f32 %v592, 0.0
    %v678 = vmax.f32 %v595, 0.0
    %v679 = vmax.f32 %v598, 0.0
    %v680 = vmax.f32 %v601, 0.0
    %v681 = vmax.f32 %v604, 0.0
    %v682 = vmax.f32 %v607, 0.0
    %v683 = vmax.f32 %v610, 0.0
    %v684 = vmax.f32 %v613, 0.0
    %v685 = vmax.f32 %v616, 0.0
    %v686 = vmax.f32 %v619, 0.0
    %v687 = vmax.f32 %v622, 0.0
    %v688 = vld [vmem:[%s3] sm:$0xff]
    %v689 = vld [vmem:[%s3 + $0x8] sm:$0xff]
    %v690 = vld [vmem:[%s3 + $0x10] sm:$0xff]
    %v691 = vld [vmem:[%s3 + $0x18] sm:$0xff]
    %v692 = vld [vmem:[%s3 + $0x20] sm:$0xff]
    %v693 = vld [vmem:[%s3 + $0x28] sm:$0xff]
    %v694 = vld [vmem:[%s3 + $0x30] sm:$0xff]
    %v695 = vld [vmem:[%s3 + $0x38] sm:$0xff]
    %v696 = vld [vmem:[%s3 + $0x40] sm:$0xff]
    %v697 = vld [vmem:[%s3 + $0x48] sm:$0xff]
    %v698 = vld [vmem:[%s3 + $0x50] sm:$0xff]
    %v699 = vld [vmem:[%s3 + $0x58] sm:$0xff]
    %v700 = vld [vmem:[%s3 + $0x60] sm:$0xff]
    %v701 = vld [vmem:[%s3 + $0x68] sm:$0xff]
    %v702 = vld [vmem:[%s3 + $0x70] sm:$0xff]
    %v703 = vld [vmem:[%s3 + $0x78] sm:$0xff]
    %704 = vmatpush.msra.mxu0 %v639
    %705 = vmatpush.msra.mxu0 %v638
    %706 = vmatpush.msra.mxu0 %v637
    %707 = vmatpush.msra.mxu0 %v636
    %708 = vmatpush.msra.mxu0 %v635
    %709 = vmatpush.msra.mxu0 %v634
    %710 = vmatpush.msra.mxu0 %v633
    %711 = vmatpush.msra.mxu0 %v632
    %712 = vmatpush.msra.mxu0 %v631
    %713 = vmatpush.msra.mxu0 %v630
    %714 = vmatpush.msra.mxu0 %v629
    %715 = vmatpush.msra.mxu0 %v628
    %716 = vmatpush.msra.mxu0 %v627
    %717 = vmatpush.msra.mxu0 %v626
    %718 = vmatpush.msra.mxu0 %v625
    %719 = vmatpush.msra.mxu0 %v624
    %720 = vmatmul.f32.gmra.mxu0 %v688
    %v721 = vpop.f32.mrf.mxu0
    %v722 = vadd.f32 0.0, %v721
    %723 = vmatmul.f32.gmra.mxu0 %v692
    %v724 = vpop.f32.mrf.mxu0
    %v725 = vadd.f32 0.0, %v724
    %726 = vmatmul.f32.gmra.mxu0 %v696
    %v727 = vpop.f32.mrf.mxu0
    %v728 = vadd.f32 0.0, %v727
    %729 = vmatmul.f32.gmra.mxu0 %v700
    %v730 = vpop.f32.mrf.mxu0
    %v731 = vadd.f32 0.0, %v730
    %732 = vdwg.mxu0
    %733 = vmatpush.msra.mxu0 %v655
    %734 = vmatpush.msra.mxu0 %v654
    %735 = vmatpush.msra.mxu0 %v653
    %736 = vmatpush.msra.mxu0 %v652
    %737 = vmatpush.msra.mxu0 %v651
    %738 = vmatpush.msra.mxu0 %v650
    %739 = vmatpush.msra.mxu0 %v649
    %740 = vmatpush.msra.mxu0 %v648
    %741 = vmatpush.msra.mxu0 %v647
    %742 = vmatpush.msra.mxu0 %v646
    %743 = vmatpush.msra.mxu0 %v645
    %744 = vmatpush.msra.mxu0 %v644
    %745 = vmatpush.msra.mxu0 %v643
    %746 = vmatpush.msra.mxu0 %v642
    %747 = vmatpush.msra.mxu0 %v641
    %748 = vmatpush.msra.mxu0 %v640
    %749 = vmatmul.f32.gmra.mxu0 %v689
    %v750 = vpop.f32.mrf.mxu0
    %v751 = vadd.f32 %v722, %v750
    %752 = vmatmul.f32.gmra.mxu0 %v693
    %v753 = vpop.f32.mrf.mxu0
    %v754 = vadd.f32 %v725, %v753
    %755 = vmatmul.f32.gmra.mxu0 %v697
    %v756 = vpop.f32.mrf.mxu0
    %v757 = vadd.f32 %v728, %v756
    %758 = vmatmul.f32.gmra.mxu0 %v701
    %v759 = vpop.f32.mrf.mxu0
    %v760 = vadd.f32 %v731, %v759
    %761 = vdwg.mxu0
    %762 = vmatpush.msra.mxu0 %v671
    %763 = vmatpush.msra.mxu0 %v670
    %764 = vmatpush.msra.mxu0 %v669
    %765 = vmatpush.msra.mxu0 %v668
    %766 = vmatpush.msra.mxu0 %v667
    %767 = vmatpush.msra.mxu0 %v666
    %768 = vmatpush.msra.mxu0 %v665
    %769 = vmatpush.msra.mxu0 %v664
    %770 = vmatpush.msra.mxu0 %v663
    %771 = vmatpush.msra.mxu0 %v662
    %772 = vmatpush.msra.mxu0 %v661
    %773 = vmatpush.msra.mxu0 %v660
    %774 = vmatpush.msra.mxu0 %v659
    %775 = vmatpush.msra.mxu0 %v658
    %776 = vmatpush.msra.mxu0 %v657
    %777 = vmatpush.msra.mxu0 %v656
    %778 = vmatmul.f32.gmra.mxu0 %v690
    %v779 = vpop.f32.mrf.mxu0
    %v780 = vadd.f32 %v751, %v779
    %781 = vmatmul.f32.gmra.mxu0 %v694
    %v782 = vpop.f32.mrf.mxu0
    %v783 = vadd.f32 %v754, %v782
    %784 = vmatmul.f32.gmra.mxu0 %v698
    %v785 = vpop.f32.mrf.mxu0
    %v786 = vadd.f32 %v757, %v785
    %787 = vmatmul.f32.gmra.mxu0 %v702
    %v788 = vpop.f32.mrf.mxu0
    %v789 = vadd.f32 %v760, %v788
    %790 = vdwg.mxu0
    %791 = vmatpush.msra.mxu0 %v687
    %792 = vmatpush.msra.mxu0 %v686
    %793 = vmatpush.msra.mxu0 %v685
    %794 = vmatpush.msra.mxu0 %v684
    %795 = vmatpush.msra.mxu0 %v683
    %796 = vmatpush.msra.mxu0 %v682
    %797 = vmatpush.msra.mxu0 %v681
    %798 = vmatpush.msra.mxu0 %v680
    %799 = vmatpush.msra.mxu0 %v679
    %800 = vmatpush.msra.mxu0 %v678
    %801 = vmatpush.msra.mxu0 %v677
    %802 = vmatpush.msra.mxu0 %v676
    %803 = vmatpush.msra.mxu0 %v675
    %804 = vmatpush.msra.mxu0 %v674
    %805 = vmatpush.msra.mxu0 %v673
    %806 = vmatpush.msra.mxu0 %v672
    %807 = vmatmul.f32.gmra.mxu0 %v691
    %v808 = vpop.f32.mrf.mxu0
    %v809 = vadd.f32 %v780, %v808
    %810 = vmatmul.f32.gmra.mxu0 %v695
    %v811 = vpop.f32.mrf.mxu0
    %v812 = vadd.f32 %v783, %v811
    %813 = vmatmul.f32.gmra.mxu0 %v699
    %v814 = vpop.f32.mrf.mxu0
    %v815 = vadd.f32 %v786, %v814
    %816 = vmatmul.f32.gmra.mxu0 %v703
    %v817 = vpop.f32.mrf.mxu0
    %v818 = vadd.f32 %v789, %v817
    %819 = vdwg.mxu0
    %v820 = vld [vmem:[%s17] sm:$0xff]
    %v821 = vld [vmem:[%s17 + $0x8] sm:$0xff]
    %v822 = vld [vmem:[%s17 + $0x10] sm:$0xff]
    %v823 = vld [vmem:[%s17 + $0x18] sm:$0xff]
    %v824 = vld [vmem:[%s19] sm:$0x1]
    %v826 = vperm.slane %v824, 0
    %vm828 = vcmask 261120
    %v830 = vsel %vm828, %v809, 0
    %v833 = vsel %vm828, %v812, 0
    %v836 = vsel %vm828, %v815, 0
    %v839 = vsel %vm828, %v818, 0
    %841 = vmatpush.msra.mxu0 0.0
    %842 = vmatpush.msra.mxu0 0.0
    %843 = vmatpush.msra.mxu0 0.0
    %844 = vmatpush.msra.mxu0 0.0
    %845 = vmatpush.msra.mxu0 0.0
    %846 = vmatpush.msra.mxu0 0.0
    %847 = vmatpush.msra.mxu0 0.0
    %848 = vmatpush.msra.mxu0 0.0
    %849 = vmatpush.msra.mxu0 0.0
    %850 = vmatpush.msra.mxu0 0.0
    %851 = vmatpush.msra.mxu0 0.0
    %852 = vmatpush.msra.mxu0 0.0
    %853 = vmatpush.msra.mxu0 %v823
    %854 = vmatpush.msra.mxu0 %v822
    %855 = vmatpush.msra.mxu0 %v821
    %856 = vmatpush.msra.mxu0 %v820
    %857 = vmatmul.f32.gmra.mxu0 %v830
    %v858 = vpop.f32.mrf.mxu0
    %v859 = vadd.f32 %v826, %v858
    %860 = vmatmul.f32.gmra.mxu0 %v833
    %v861 = vpop.f32.mrf.mxu0
    %v862 = vadd.f32 %v826, %v861
    %863 = vmatmul.f32.gmra.mxu0 %v836
    %v864 = vpop.f32.mrf.mxu0
    %v865 = vadd.f32 %v826, %v864
    %866 = vmatmul.f32.gmra.mxu0 %v839
    %v867 = vpop.f32.mrf.mxu0
    %v868 = vadd.f32 %v826, %v867
    %869 = vdwg.mxu0
    %v870 = vmax.f32 %v859, 0.0
    %v871 = vmax.f32 %v862, 0.0
    %v872 = vmax.f32 %v865, 0.0
    %v873 = vmax.f32 %v868, 0.0
    %v874 = vld [vmem:[%s5] sm:$0xff]
    %v875 = vld [vmem:[%s5 + $0x8] sm:$0xff]
    %v876 = vld [vmem:[%s21] sm:$0xff]
    %v877 = vld [vmem:[%s21 + $0x8] sm:$0xff]
    %v878 = vld [vmem:[%s7] sm:$0xff]
    %v879 = vld [vmem:[%s7 + $0x8] sm:$0xff]
    %vm880 = vcmask 130048
    %v882 = vsel %vm880, %v874, 0
    %v885 = vsel %vm880, %v875, 0
    %887 = vmatpush.msra.mxu0 0.0
    %888 = vmatpush.msra.mxu0 0.0
    %889 = vmatpush.msra.mxu0 0.0
    %890 = vmatpush.msra.mxu0 0.0
    %891 = vmatpush.msra.mxu0 0.0
    %892 = vmatpush.msra.mxu0 0.0
    %893 = vmatpush.msra.mxu0 0.0
    %894 = vmatpush.msra.mxu0 0.0
    %895 = vmatpush.msra.mxu0 0.0
    %896 = vmatpush.msra.mxu0 0.0
    %897 = vmatpush.msra.mxu0 0.0
    %898 = vmatpush.msra.mxu0 0.0
    %899 = vmatpush.msra.mxu0 0.0
    %900 = vmatpush.msra.mxu0 0.0
    %901 = vmatpush.msra.mxu0 %v877
    %902 = vmatpush.msra.mxu0 %v876
    %903 = vmatmul.f32.gmra.mxu0 %v882
    %v904 = vpop.f32.mrf.mxu0
    %v905 = vadd.f32 %v878, %v904
    %906 = vmatmul.f32.gmra.mxu0 %v885
    %v907 = vpop.f32.mrf.mxu0
    %v908 = vadd.f32 %v879, %v907
    %909 = vdwg.mxu0
    %v910 = vld [vmem:[%s23] sm:$0xff]
    %v911 = vld [vmem:[%s23 + $0x8] sm:$0xff]
    %v912 = vld [vmem:[%s23 + $0x10] sm:$0xff]
    %v913 = vld [vmem:[%s23 + $0x18] sm:$0xff]
    %v914 = vld [vmem:[%s25] sm:$0x1]
    %v916 = vperm.slane %v914, 0
    %v919 = vsel %vm828, %v905, 0
    %v922 = vsel %vm828, %v908, 0
    %924 = vmatpush.msra.mxu0 0.0
    %925 = vmatpush.msra.mxu0 0.0
    %926 = vmatpush.msra.mxu0 0.0
    %927 = vmatpush.msra.mxu0 0.0
    %928 = vmatpush.msra.mxu0 0.0
    %929 = vmatpush.msra.mxu0 0.0
    %930 = vmatpush.msra.mxu0 0.0
    %931 = vmatpush.msra.mxu0 0.0
    %932 = vmatpush.msra.mxu0 0.0
    %933 = vmatpush.msra.mxu0 0.0
    %934 = vmatpush.msra.mxu0 0.0
    %935 = vmatpush.msra.mxu0 0.0
    %936 = vmatpush.msra.mxu0 %v913
    %937 = vmatpush.msra.mxu0 %v912
    %938 = vmatpush.msra.mxu0 %v911
    %939 = vmatpush.msra.mxu0 %v910
    %940 = vmatmul.f32.gmra.mxu0 %v919
    %v941 = vpop.f32.mrf.mxu0
    %v942 = vadd.f32 %v916, %v941
    %943 = vmatmul.f32.gmra.mxu0 %v922
    %v944 = vpop.f32.mrf.mxu0
    %v945 = vadd.f32 %v916, %v944
    %946 = vdwg.mxu0
    %949 = vrot.lane.b32.xlu0 %v942, 96
    %v950 = vpop.permute.xlu0 %949
    %951 = vrot.lane.b32.xlu0 %v945, 96
    %v952 = vpop.permute.xlu0 %951
    %v953 = vsel %vm828, %v942, 0
    %v955 = vsel %vm828, %v945, 0
    %v957 = vsel %vm828, %v950, 0
    %v959 = vsel %vm828, %v952, 0
    %961 = vmatpush.xpose.msra.mxu0 0.0
    %962 = vmatpush.xpose.msra.mxu0 0.0
    %963 = vmatpush.xpose.msra.mxu0 0.0
    %964 = vmatpush.xpose.msra.mxu0 0.0
    %965 = vmatpush.xpose.msra.mxu0 0.0
    %966 = vmatpush.xpose.msra.mxu0 0.0
    %967 = vmatpush.xpose.msra.mxu0 0.0
    %968 = vmatpush.xpose.msra.mxu0 0.0
    %969 = vmatpush.xpose.msra.mxu0 0.0
    %970 = vmatpush.xpose.msra.mxu0 0.0
    %971 = vmatpush.xpose.msra.mxu0 0.0
    %972 = vmatpush.xpose.msra.mxu0 0.0
    %973 = vmatpush.xpose.msra.mxu0 0.0
    %974 = vmatpush.xpose.msra.mxu0 0.0
    %975 = vmatpush.xpose.msra.mxu0 %v959
    %976 = vmatpush.xpose.msra.mxu0 %v957
    %977 = vmatmul.f32.gmra.mxu0 %v953
    %v978 = vpop.f32.mrf.mxu0
    %v979 = vadd.f32 0.0, %v978
    %980 = vmatmul.f32.gmra.mxu0 %v955
    %v981 = vpop.f32.mrf.mxu0
    %v982 = vadd.f32 0.0, %v981
    %983 = vdwg.mxu0
    %v984 = vmul.f32 %v979, 0.17677669
    %v985 = vmul.f32 %v982, 0.17677669
    %v986 = vld [vmem:[%s9] sm:$0xff]
    %v987 = vld [vmem:[%s9 + $0x8] sm:$0xff]
    %v988 = vadd.f32 %v984, %v986
    %v989 = vadd.f32 %v985, %v987
    %v990 = vsel %vm880, %v988, -inf
    %991 = vmax.xlane.f32.xlu0 %v990
    %v992 = vpop.xlane.xlu0 %991
    %v993 = vsel %vm880, %v989, -inf
    %994 = vmax.xlane.f32.xlu0 %v993
    %v995 = vpop.xlane.xlu0 %994
    %v996 = vsub.f32 %v988, %v992
    %v997 = vsub.f32 %v989, %v995
    %v998 = vmul.f32 %v996, 1.442695
    %v999 = vpow.pop %v998
    %v1000 = vmul.f32 %v997, 1.442695
    %v1001 = vpow.pop %v1000
    %v1002 = vsel %vm880, %v999, 0.0
    %1003 = vadd.xlane.f32.xlu0 %v1002
    %v1004 = vpop.xlane.xlu0 %1003
    %v1005 = vsel %vm880, %v1001, 0.0
    %1006 = vadd.xlane.f32.xlu0 %v1005
    %v1007 = vpop.xlane.xlu0 %1006
    %v1008 = vrcp.pop %v1004
    %v1009 = vrcp.pop %v1007
    %v1010 = vmul.f32 %v999, %v1008
    %v1011 = vmul.f32 %v1001, %v1009
    %1012 = vrot.lane.b32.xlu0 %v942, 64
    %v1013 = vpop.permute.xlu0 %1012
    %1014 = vrot.lane.b32.xlu0 %v945, 64
    %v1015 = vpop.permute.xlu0 %1014
    %v1019 = vsel %vm880, %v1010, 0
    %v1022 = vsel %vm880, %v1011, 0
    %1024 = vmatpush.msra.mxu0 0.0
    %1025 = vmatpush.msra.mxu0 0.0
    %1026 = vmatpush.msra.mxu0 0.0
    %1027 = vmatpush.msra.mxu0 0.0
    %1028 = vmatpush.msra.mxu0 0.0
    %1029 = vmatpush.msra.mxu0 0.0
    %1030 = vmatpush.msra.mxu0 0.0
    %1031 = vmatpush.msra.mxu0 0.0
    %1032 = vmatpush.msra.mxu0 0.0
    %1033 = vmatpush.msra.mxu0 0.0
    %1034 = vmatpush.msra.mxu0 0.0
    %1035 = vmatpush.msra.mxu0 0.0
    %1036 = vmatpush.msra.mxu0 0.0
    %1037 = vmatpush.msra.mxu0 0.0
    %1038 = vmatpush.msra.mxu0 %v1015
    %1039 = vmatpush.msra.mxu0 %v1013
    %1040 = vmatmul.f32.gmra.mxu0 %v1019
    %v1041 = vpop.f32.mrf.mxu0
    %v1042 = vadd.f32 0.0, %v1041
    %1043 = vmatmul.f32.gmra.mxu0 %v1022
    %v1044 = vpop.f32.mrf.mxu0
    %v1045 = vadd.f32 0.0, %v1044
    %1046 = vdwg.mxu0
    %v1047 = vld [vmem:[%s27] sm:$0xff]
    %v1048 = vld [vmem:[%s27 + $0x8] sm:$0xff]
    %v1049 = vld [vmem:[%s27 + $0x10] sm:$0xff]
    %v1050 = vld [vmem:[%s27 + $0x18] sm:$0xff]
    %v1052 = vsel %vm828, %v1042, 0
    %v1055 = vsel %vm828, %v1045, 0
    %1057 = vmatpush.msra.mxu0 0.0
    %1058 = vmatpush.msra.mxu0 0.0
    %1059 = vmatpush.msra.mxu0 0.0
    %1060 = vmatpush.msra.mxu0 0.0
    %1061 = vmatpush.msra.mxu0 0.0
    %1062 = vmatpush.msra.mxu0 0.0
    %1063 = vmatpush.msra.mxu0 0.0
    %1064 = vmatpush.msra.mxu0 0.0
    %1065 = vmatpush.msra.mxu0 0.0
    %1066 = vmatpush.msra.mxu0 0.0
    %1067 = vmatpush.msra.mxu0 0.0
    %1068 = vmatpush.msra.mxu0 0.0
    %1069 = vmatpush.msra.mxu0 %v1050
    %1070 = vmatpush.msra.mxu0 %v1049
    %1071 = vmatpush.msra.mxu0 %v1048
    %1072 = vmatpush.msra.mxu0 %v1047
    %1073 = vmatmul.f32.gmra.mxu0 %v1052
    %v1074 = vpop.f32.mrf.mxu0
    %v1075 = vadd.f32 0.0, %v1074
    %1076 = vmatmul.f32.gmra.mxu0 %v1055
    %v1077 = vpop.f32.mrf.mxu0
    %v1078 = vadd.f32 0.0, %v1077
    %1079 = vdwg.mxu0
    %v1080 = vadd.f32 %v905, %v1075
    %v1081 = vadd.f32 %v908, %v1078
    %v1082 = vld [vmem:[%s29] sm:$0x1]
    %v1084 = vperm.slane %v1082, 0
    %v1086 = vadd.f32 %v1080, %v1084
    %v1087 = vadd.f32 %v1081, %v1084
    %v1088 = vld [vmem:[%s55] sm:$0x1]
    %v1089 = vld [vmem:[%s57] sm:$0x1]
    %v1090 = vsel %vm828, %v1086, 0.0
    %1091 = vadd.xlane.f32.xlu0 %v1090
    %v1092 = vpop.xlane.xlu0 %1091
    %v1093 = vsel %vm828, %v1087, 0.0
    %1094 = vadd.xlane.f32.xlu0 %v1093
    %v1095 = vpop.xlane.xlu0 %1094
    %v1096 = vrcp.pop 32.0
    %v1097 = vmul.f32 32.0, %v1096
    %v1098 = vsub.f32 1.0, %v1097
    %v1099 = vmul.f32 %v1096, %v1098
    %v1100 = vadd.f32 %v1096, %v1099
    %vm1101 = vweird.f32 %v1096
    %v1102 = vsel %vm1101, %v1096, %v1100
    %v1103 = vmul.f32 %v1092, %v1102
    %v1104 = vmul.f32 %v1095, %v1102
    %v1105 = vsub.f32 %v1086, %v1103
    %v1106 = vsub.f32 %v1087, %v1104
    %v1107 = vmul.f32 %v1105, %v1105
    %v1108 = vmul.f32 %v1106, %v1106
    %v1109 = vsel %vm828, %v1107, 0.0
    %1110 = vadd.xlane.f32.xlu0 %v1109
    %v1111 = vpop.xlane.xlu0 %1110
    %v1112 = vsel %vm828, %v1108, 0.0
    %1113 = vadd.xlane.f32.xlu0 %v1112
    %v1114 = vpop.xlane.xlu0 %1113
    %v1115 = vmul.f32 %v1111, %v1102
    %v1116 = vmul.f32 %v1114, %v1102
    %v1117 = vadd.f32 %v1115, 1e-05
    %v1118 = vadd.f32 %v1116, 1e-05
    %v1119 = vrsqrt.pop %v1117
    %v1120 = vmul.f32 %v1119, %v1117
    %v1121 = vmul.f32 %v1120, %v1119
    %v1122 = vmul.f32 0.5, %v1121
    %v1123 = vsub.f32 1.5, %v1122
    %v1124 = vmul.f32 %v1119, %v1123
    %vm1125 = vweird.f32 %v1117
    %vm1126 = vweird.f32 %v1119
    %vm1127 = vmor %vm1125, %vm1126
    %v1128 = vsel %vm1127, %v1119, %v1124
    %v1129 = vrsqrt.pop %v1118
    %v1130 = vmul.f32 %v1129, %v1118
    %v1131 = vmul.f32 %v1130, %v1129
    %v1132 = vmul.f32 0.5, %v1131
    %v1133 = vsub.f32 1.5, %v1132
    %v1134 = vmul.f32 %v1129, %v1133
    %vm1135 = vweird.f32 %v1118
    %vm1136 = vweird.f32 %v1129
    %vm1137 = vmor %vm1135, %vm1136
    %v1138 = vsel %vm1137, %v1129, %v1134
    %v1139 = vmul.f32 %v1105, %v1128
    %v1140 = vmul.f32 %v1106, %v1138
    %v1142 = vperm.slane %v1088, 0
    %v1144 = vmul.f32 %v1139, %v1142
    %v1145 = vmul.f32 %v1140, %v1142
    %v1147 = vperm.slane %v1089, 0
    %v1149 = vadd.f32 %v1144, %v1147
    %v1150 = vadd.f32 %v1145, %v1147
    %vm1151 = vcmask 64512
    %1152 = vst.msk [vmem:[#allocation4] sm:$0xff] %vm1151, %v1010
    %1153 = vrot.lane.b32.xlu0 %v1011, 120
    %v1154 = vpop.permute.xlu0 %1153
    %s1156 = scalar_lea.vmem [#allocation4], 8
    %1157 = vst.msk [vmem:[%s1156] sm:$0xff] %vm1151, %v1154
    %v1158 = vld [vmem:[%s31] sm:$0xff]
    %v1159 = vld [vmem:[%s31 + $0x8] sm:$0xff]
    %v1160 = vld [vmem:[%s31 + $0x10] sm:$0xff]
    %v1161 = vld [vmem:[%s31 + $0x18] sm:$0xff]
    %v1162 = vld [vmem:[%s33] sm:$0x1]
    %v1164 = vperm.slane %v1162, 0
    %v1167 = vsel %vm828, %v1149, 0
    %v1170 = vsel %vm828, %v1150, 0
    %1172 = vmatpush.msra.mxu0 0.0
    %1173 = vmatpush.msra.mxu0 0.0
    %1174 = vmatpush.msra.mxu0 0.0
    %1175 = vmatpush.msra.mxu0 0.0
    %1176 = vmatpush.msra.mxu0 0.0
    %1177 = vmatpush.msra.mxu0 0.0
    %1178 = vmatpush.msra.mxu0 0.0
    %1179 = vmatpush.msra.mxu0 0.0
    %1180 = vmatpush.msra.mxu0 0.0
    %1181 = vmatpush.msra.mxu0 0.0
    %1182 = vmatpush.msra.mxu0 0.0
    %1183 = vmatpush.msra.mxu0 0.0
    %1184 = vmatpush.msra.mxu0 %v1161
    %1185 = vmatpush.msra.mxu0 %v1160
    %1186 = vmatpush.msra.mxu0 %v1159
    %1187 = vmatpush.msra.mxu0 %v1158
    %1188 = vmatmul.f32.gmra.mxu0 %v1167
    %v1189 = vpop.f32.mrf.mxu0
    %v1190 = vadd.f32 %v1164, %v1189
    %1191 = vmatmul.f32.gmra.mxu0 %v1170
    %v1192 = vpop.f32.mrf.mxu0
    %v1193 = vadd.f32 %v1164, %v1192
    %1194 = vdwg.mxu0
    %v1195 = vld [vmem:[%s35] sm:$0xff]
    %v1196 = vld [vmem:[%s35 + $0x8] sm:$0xff]
    %v1197 = vld [vmem:[%s35 + $0x10] sm:$0xff]
    %v1198 = vld [vmem:[%s35 + $0x18] sm:$0xff]
    %v1199 = vld [vmem:[%s37] sm:$0x1]
    %v1201 = vperm.slane %v1199, 0
    %v1204 = vsel %vm828, %v870, 0
    %v1207 = vsel %vm828, %v871, 0
    %v1210 = vsel %vm828, %v872, 0
    %v1213 = vsel %vm828, %v873, 0
    %1215 = vmatpush.msra.mxu0 0.0
    %1216 = vmatpush.msra.mxu0 0.0
    %1217 = vmatpush.msra.mxu0 0.0
    %1218 = vmatpush.msra.mxu0 0.0
    %1219 = vmatpush.msra.mxu0 0.0
    %1220 = vmatpush.msra.mxu0 0.0
    %1221 = vmatpush.msra.mxu0 0.0
    %1222 = vmatpush.msra.mxu0 0.0
    %1223 = vmatpush.msra.mxu0 0.0
    %1224 = vmatpush.msra.mxu0 0.0
    %1225 = vmatpush.msra.mxu0 0.0
    %1226 = vmatpush.msra.mxu0 0.0
    %1227 = vmatpush.msra.mxu0 %v1198
    %1228 = vmatpush.msra.mxu0 %v1197
    %1229 = vmatpush.msra.mxu0 %v1196
    %1230 = vmatpush.msra.mxu0 %v1195
    %1231 = vmatmul.f32.gmra.mxu0 %v1204
    %v1232 = vpop.f32.mrf.mxu0
    %v1233 = vadd.f32 %v1201, %v1232
    %1234 = vmatmul.f32.gmra.mxu0 %v1207
    %v1235 = vpop.f32.mrf.mxu0
    %v1236 = vadd.f32 %v1201, %v1235
    %1237 = vmatmul.f32.gmra.mxu0 %v1210
    %v1238 = vpop.f32.mrf.mxu0
    %v1239 = vadd.f32 %v1201, %v1238
    %1240 = vmatmul.f32.gmra.mxu0 %v1213
    %v1241 = vpop.f32.mrf.mxu0
    %v1242 = vadd.f32 %v1201, %v1241
    %1243 = vdwg.mxu0
    %v1245 = vsel %vm828, %v1190, 0
    %v1248 = vsel %vm828, %v1193, 0
    %v1251 = vsel %vm828, %v1233, 0
    %v1254 = vsel %vm828, %v1236, 0
    %v1257 = vsel %vm828, %v1239, 0
    %v1260 = vsel %vm828, %v1242, 0
    %1262 = vmatpush.xpose.msra.mxu0 0.0
    %1263 = vmatpush.xpose.msra.mxu0 0.0
    %1264 = vmatpush.xpose.msra.mxu0 0.0
    %1265 = vmatpush.xpose.msra.mxu0 0.0
    %1266 = vmatpush.xpose.msra.mxu0 0.0
    %1267 = vmatpush.xpose.msra.mxu0 0.0
    %1268 = vmatpush.xpose.msra.mxu0 0.0
    %1269 = vmatpush.xpose.msra.mxu0 0.0
    %1270 = vmatpush.xpose.msra.mxu0 0.0
    %1271 = vmatpush.xpose.msra.mxu0 0.0
    %1272 = vmatpush.xpose.msra.mxu0 0.0
    %1273 = vmatpush.xpose.msra.mxu0 0.0
    %1274 = vmatpush.xpose.msra.mxu0 %v1260
    %1275 = vmatpush.xpose.msra.mxu0 %v1257
    %1276 = vmatpush.xpose.msra.mxu0 %v1254
    %1277 = vmatpush.xpose.msra.mxu0 %v1251
    %1278 = vmatmul.f32.gmra.mxu0 %v1245
    %v1279 = vpop.f32.mrf.mxu0
    %v1280 = vadd.f32 0.0, %v1279
    %1281 = vmatmul.f32.gmra.mxu0 %v1248
    %v1282 = vpop.f32.mrf.mxu0
    %v1283 = vadd.f32 0.0, %v1282
    %1284 = vdwg.mxu0
    %v1285 = vmul.f32 %v1280, 0.17677669
    %v1286 = vmul.f32 %v1283, 0.17677669
    %v1287 = vld [vmem:[%s11] sm:$0xff]
    %v1288 = vld [vmem:[%s11 + $0x8] sm:$0xff]
    %v1289 = vadd.f32 %v1285, %v1287
    %v1290 = vadd.f32 %v1286, %v1288
    %v1291 = vsel %vm828, %v1289, -inf
    %1292 = vmax.xlane.f32.xlu0 %v1291
    %v1293 = vpop.xlane.xlu0 %1292
    %v1294 = vsel %vm828, %v1290, -inf
    %1295 = vmax.xlane.f32.xlu0 %v1294
    %v1296 = vpop.xlane.xlu0 %1295
    %v1297 = vsub.f32 %v1289, %v1293
    %v1298 = vsub.f32 %v1290, %v1296
    %v1299 = vmul.f32 %v1297, 1.442695
    %v1300 = vpow.pop %v1299
    %v1301 = vmul.f32 %v1298, 1.442695
    %v1302 = vpow.pop %v1301
    %v1303 = vsel %vm828, %v1300, 0.0
    %1304 = vadd.xlane.f32.xlu0 %v1303
    %v1305 = vpop.xlane.xlu0 %1304
    %v1306 = vsel %vm828, %v1302, 0.0
    %1307 = vadd.xlane.f32.xlu0 %v1306
    %v1308 = vpop.xlane.xlu0 %1307
    %v1309 = vrcp.pop %v1305
    %v1310 = vrcp.pop %v1308
    %v1311 = vmul.f32 %v1300, %v1309
    %v1312 = vmul.f32 %v1302, %v1310
    %1313 = vrot.lane.b32.xlu0 %v1233, 96
    %v1314 = vpop.permute.xlu0 %1313
    %1315 = vrot.lane.b32.xlu0 %v1236, 96
    %v1316 = vpop.permute.xlu0 %1315
    %1317 = vrot.lane.b32.xlu0 %v1239, 96
    %v1318 = vpop.permute.xlu0 %1317
    %1319 = vrot.lane.b32.xlu0 %v1242, 96
    %v1320 = vpop.permute.xlu0 %1319
    %v1326 = vsel %vm828, %v1311, 0
    %v1329 = vsel %vm828, %v1312, 0
    %1331 = vmatpush.msra.mxu0 0.0
    %1332 = vmatpush.msra.mxu0 0.0
    %1333 = vmatpush.msra.mxu0 0.0
    %1334 = vmatpush.msra.mxu0 0.0
    %1335 = vmatpush.msra.mxu0 0.0
    %1336 = vmatpush.msra.mxu0 0.0
    %1337 = vmatpush.msra.mxu0 0.0
    %1338 = vmatpush.msra.mxu0 0.0
    %1339 = vmatpush.msra.mxu0 0.0
    %1340 = vmatpush.msra.mxu0 0.0
    %1341 = vmatpush.msra.mxu0 0.0
    %1342 = vmatpush.msra.mxu0 0.0
    %1343 = vmatpush.msra.mxu0 %v1320
    %1344 = vmatpush.msra.mxu0 %v1318
    %1345 = vmatpush.msra.mxu0 %v1316
    %1346 = vmatpush.msra.mxu0 %v1314
    %1347 = vmatmul.f32.gmra.mxu0 %v1326
    %v1348 = vpop.f32.mrf.mxu0
    %v1349 = vadd.f32 0.0, %v1348
    %1350 = vmatmul.f32.gmra.mxu0 %v1329
    %v1351 = vpop.f32.mrf.mxu0
    %v1352 = vadd.f32 0.0, %v1351
    %1353 = vdwg.mxu0
    %v1354 = vld [vmem:[%s39] sm:$0xff]
    %v1355 = vld [vmem:[%s39 + $0x8] sm:$0xff]
    %v1356 = vld [vmem:[%s39 + $0x10] sm:$0xff]
    %v1357 = vld [vmem:[%s39 + $0x18] sm:$0xff]
    %v1359 = vsel %vm828, %v1349, 0
    %v1362 = vsel %vm828, %v1352, 0
    %1364 = vmatpush.msra.mxu0 0.0
    %1365 = vmatpush.msra.mxu0 0.0
    %1366 = vmatpush.msra.mxu0 0.0
    %1367 = vmatpush.msra.mxu0 0.0
    %1368 = vmatpush.msra.mxu0 0.0
    %1369 = vmatpush.msra.mxu0 0.0
    %1370 = vmatpush.msra.mxu0 0.0
    %1371 = vmatpush.msra.mxu0 0.0
    %1372 = vmatpush.msra.mxu0 0.0
    %1373 = vmatpush.msra.mxu0 0.0
    %1374 = vmatpush.msra.mxu0 0.0
    %1375 = vmatpush.msra.mxu0 0.0
    %1376 = vmatpush.msra.mxu0 %v1357
    %1377 = vmatpush.msra.mxu0 %v1356
    %1378 = vmatpush.msra.mxu0 %v1355
    %1379 = vmatpush.msra.mxu0 %v1354
    %1380 = vmatmul.f32.gmra.mxu0 %v1359
    %v1381 = vpop.f32.mrf.mxu0
    %v1382 = vadd.f32 0.0, %v1381
    %1383 = vmatmul.f32.gmra.mxu0 %v1362
    %v1384 = vpop.f32.mrf.mxu0
    %v1385 = vadd.f32 0.0, %v1384
    %1386 = vdwg.mxu0
    %v1387 = vadd.f32 %v1149, %v1382
    %v1388 = vadd.f32 %v1150, %v1385
    %v1389 = vld [vmem:[%s41] sm:$0x1]
    %v1391 = vperm.slane %v1389, 0
    %v1393 = vadd.f32 %v1387, %v1391
    %v1394 = vadd.f32 %v1388, %v1391
    %v1395 = vld [vmem:[%s59] sm:$0x1]
    %v1396 = vld [vmem:[%s61] sm:$0x1]
    %v1397 = vsel %vm828, %v1393, 0.0
    %1398 = vadd.xlane.f32.xlu0 %v1397
    %v1399 = vpop.xlane.xlu0 %1398
    %v1400 = vsel %vm828, %v1394, 0.0
    %1401 = vadd.xlane.f32.xlu0 %v1400
    %v1402 = vpop.xlane.xlu0 %1401
    %v1403 = vmul.f32 %v1399, %v1102
    %v1404 = vmul.f32 %v1402, %v1102
    %v1405 = vsub.f32 %v1393, %v1403
    %v1406 = vsub.f32 %v1394, %v1404
    %v1407 = vmul.f32 %v1405, %v1405
    %v1408 = vmul.f32 %v1406, %v1406
    %v1409 = vsel %vm828, %v1407, 0.0
    %1410 = vadd.xlane.f32.xlu0 %v1409
    %v1411 = vpop.xlane.xlu0 %1410
    %v1412 = vsel %vm828, %v1408, 0.0
    %1413 = vadd.xlane.f32.xlu0 %v1412
    %v1414 = vpop.xlane.xlu0 %1413
    %v1415 = vmul.f32 %v1411, %v1102
    %v1416 = vmul.f32 %v1414, %v1102
    %v1417 = vadd.f32 %v1415, 1e-05
    %v1418 = vadd.f32 %v1416, 1e-05
    %v1419 = vrsqrt.pop %v1417
    %v1420 = vmul.f32 %v1419, %v1417
    %v1421 = vmul.f32 %v1420, %v1419
    %v1422 = vmul.f32 0.5, %v1421
    %v1423 = vsub.f32 1.5, %v1422
    %v1424 = vmul.f32 %v1419, %v1423
    %vm1425 = vweird.f32 %v1417
    %vm1426 = vweird.f32 %v1419
    %vm1427 = vmor %vm1425, %vm1426
    %v1428 = vsel %vm1427, %v1419, %v1424
    %v1429 = vrsqrt.pop %v1418
    %v1430 = vmul.f32 %v1429, %v1418
    %v1431 = vmul.f32 %v1430, %v1429
    %v1432 = vmul.f32 0.5, %v1431
    %v1433 = vsub.f32 1.5, %v1432
    %v1434 = vmul.f32 %v1429, %v1433
    %vm1435 = vweird.f32 %v1418
    %vm1436 = vweird.f32 %v1429
    %vm1437 = vmor %vm1435, %vm1436
    %v1438 = vsel %vm1437, %v1429, %v1434
    %v1439 = vmul.f32 %v1405, %v1428
    %v1440 = vmul.f32 %v1406, %v1438
    %v1442 = vperm.slane %v1395, 0
    %v1444 = vmul.f32 %v1439, %v1442
    %v1445 = vmul.f32 %v1440, %v1442
    %v1447 = vperm.slane %v1396, 0
    %v1449 = vadd.f32 %v1444, %v1447
    %v1450 = vadd.f32 %v1445, %v1447
    %1451 = vst.msk [vmem:[#allocation2] sm:$0xff] %vm880, %v1311
    %1452 = vrot.lane.b32.xlu0 %v1312, 112
    %v1453 = vpop.permute.xlu0 %1452
    %s1455 = scalar_lea.vmem [#allocation2], 8
    %1456 = vst.msk [vmem:[%s1455] sm:$0xff] %vm880, %v1453
    %v1457 = vld [vmem:[%s43] sm:$0xff]
    %v1458 = vld [vmem:[%s43 + $0x8] sm:$0xff]
    %v1459 = vld [vmem:[%s43 + $0x10] sm:$0xff]
    %v1460 = vld [vmem:[%s43 + $0x18] sm:$0xff]
    %v1461 = vld [vmem:[%s45] sm:$0x1]
    %v1463 = vperm.slane %v1461, 0
    %v1466 = vsel %vm828, %v1449, 0
    %v1469 = vsel %vm828, %v1450, 0
    %1471 = vmatpush.msra.mxu0 0.0
    %1472 = vmatpush.msra.mxu0 0.0
    %1473 = vmatpush.msra.mxu0 0.0
    %1474 = vmatpush.msra.mxu0 0.0
    %1475 = vmatpush.msra.mxu0 0.0
    %1476 = vmatpush.msra.mxu0 0.0
    %1477 = vmatpush.msra.mxu0 0.0
    %1478 = vmatpush.msra.mxu0 0.0
    %1479 = vmatpush.msra.mxu0 0.0
    %1480 = vmatpush.msra.mxu0 0.0
    %1481 = vmatpush.msra.mxu0 0.0
    %1482 = vmatpush.msra.mxu0 0.0
    %1483 = vmatpush.msra.mxu0 %v1460
    %1484 = vmatpush.msra.mxu0 %v1459
    %1485 = vmatpush.msra.mxu0 %v1458
    %1486 = vmatpush.msra.mxu0 %v1457
    %1487 = vmatmul.f32.gmra.mxu0 %v1466
    %v1488 = vpop.f32.mrf.mxu0
    %v1489 = vadd.f32 %v1463, %v1488
    %1490 = vmatmul.f32.gmra.mxu0 %v1469
    %v1491 = vpop.f32.mrf.mxu0
    %v1492 = vadd.f32 %v1463, %v1491
    %1493 = vdwg.mxu0
    %v1494 = vmax.f32 %v1489, 0.0
    %v1495 = vmax.f32 %v1492, 0.0
    %v1496 = vld [vmem:[%s47] sm:$0xff]
    %v1497 = vld [vmem:[%s47 + $0x8] sm:$0xff]
    %v1498 = vld [vmem:[%s47 + $0x10] sm:$0xff]
    %v1499 = vld [vmem:[%s47 + $0x18] sm:$0xff]
    %v1500 = vld [vmem:[%s47 + $0x20] sm:$0xff]
    %v1501 = vld [vmem:[%s47 + $0x28] sm:$0xff]
    %v1502 = vld [vmem:[%s47 + $0x30] sm:$0xff]
    %v1503 = vld [vmem:[%s47 + $0x38] sm:$0xff]
    %v1504 = vld [vmem:[%s49] sm:$0x1]
    %v1506 = vperm.slane %v1504, 0
    %vm1508 = vcmask 523264
    %v1510 = vsel %vm1508, %v1494, 0
    %v1513 = vsel %vm1508, %v1495, 0
    %1515 = vmatpush.msra.mxu0 0.0
    %1516 = vmatpush.msra.mxu0 0.0
    %1517 = vmatpush.msra.mxu0 0.0
    %1518 = vmatpush.msra.mxu0 0.0
    %1519 = vmatpush.msra.mxu0 0.0
    %1520 = vmatpush.msra.mxu0 0.0
    %1521 = vmatpush.msra.mxu0 0.0
    %1522 = vmatpush.msra.mxu0 0.0
    %1523 = vmatpush.msra.mxu0 %v1503
    %1524 = vmatpush.msra.mxu0 %v1502
    %1525 = vmatpush.msra.mxu0 %v1501
    %1526 = vmatpush.msra.mxu0 %v1500
    %1527 = vmatpush.msra.mxu0 %v1499
    %1528 = vmatpush.msra.mxu0 %v1498
    %1529 = vmatpush.msra.mxu0 %v1497
    %1530 = vmatpush.msra.mxu0 %v1496
    %1531 = vmatmul.f32.gmra.mxu0 %v1510
    %v1532 = vpop.f32.mrf.mxu0
    %v1533 = vadd.f32 %v1506, %v1532
    %1534 = vmatmul.f32.gmra.mxu0 %v1513
    %v1535 = vpop.f32.mrf.mxu0
    %v1536 = vadd.f32 %v1506, %v1535
    %1537 = vdwg.mxu0
    %v1538 = vadd.f32 %v1449, %v1533
    %v1539 = vadd.f32 %v1450, %v1536
    %v1540 = vld [vmem:[%s63] sm:$0x1]
    %v1541 = vld [vmem:[%s65] sm:$0x1]
    %v1542 = vsel %vm828, %v1538, 0.0
    %1543 = vadd.xlane.f32.xlu0 %v1542
    %v1544 = vpop.xlane.xlu0 %1543
    %v1545 = vsel %vm828, %v1539, 0.0
    %1546 = vadd.xlane.f32.xlu0 %v1545
    %v1547 = vpop.xlane.xlu0 %1546
    %v1548 = vmul.f32 %v1544, %v1102
    %v1549 = vmul.f32 %v1547, %v1102
    %v1550 = vsub.f32 %v1538, %v1548
    %v1551 = vsub.f32 %v1539, %v1549
    %v1552 = vmul.f32 %v1550, %v1550
    %v1553 = vmul.f32 %v1551, %v1551
    %v1554 = vsel %vm828, %v1552, 0.0
    %1555 = vadd.xlane.f32.xlu0 %v1554
    %v1556 = vpop.xlane.xlu0 %1555
    %v1557 = vsel %vm828, %v1553, 0.0
    %1558 = vadd.xlane.f32.xlu0 %v1557
    %v1559 = vpop.xlane.xlu0 %1558
    %v1560 = vmul.f32 %v1556, %v1102
    %v1561 = vmul.f32 %v1559, %v1102
    %v1562 = vadd.f32 %v1560, 1e-05
    %v1563 = vadd.f32 %v1561, 1e-05
    %v1564 = vrsqrt.pop %v1562
    %v1565 = vmul.f32 %v1564, %v1562
    %v1566 = vmul.f32 %v1565, %v1564
    %v1567 = vmul.f32 0.5, %v1566
    %v1568 = vsub.f32 1.5, %v1567
    %v1569 = vmul.f32 %v1564, %v1568
    %vm1570 = vweird.f32 %v1562
    %vm1571 = vweird.f32 %v1564
    %vm1572 = vmor %vm1570, %vm1571
    %v1573 = vsel %vm1572, %v1564, %v1569
    %v1574 = vrsqrt.pop %v1563
    %v1575 = vmul.f32 %v1574, %v1563
    %v1576 = vmul.f32 %v1575, %v1574
    %v1577 = vmul.f32 0.5, %v1576
    %v1578 = vsub.f32 1.5, %v1577
    %v1579 = vmul.f32 %v1574, %v1578
    %vm1580 = vweird.f32 %v1563
    %vm1581 = vweird.f32 %v1574
    %vm1582 = vmor %vm1580, %vm1581
    %v1583 = vsel %vm1582, %v1574, %v1579
    %v1584 = vmul.f32 %v1550, %v1573
    %v1585 = vmul.f32 %v1551, %v1583
    %v1587 = vperm.slane %v1540, 0
    %v1589 = vmul.f32 %v1584, %v1587
    %v1590 = vmul.f32 %v1585, %v1587
    %v1592 = vperm.slane %v1541, 0
    %v1594 = vadd.f32 %v1589, %v1592
    %v1595 = vadd.f32 %v1590, %v1592
    %v1596 = vld [vmem:[%s51] sm:$0xff]
    %v1597 = vld [vmem:[%s51 + $0x8] sm:$0xff]
    %v1598 = vld [vmem:[%s51 + $0x10] sm:$0xff]
    %v1599 = vld [vmem:[%s51 + $0x18] sm:$0xff]
    %v1600 = vld [vmem:[%s53] sm:$0x1]
    %v1602 = vperm.slane %v1600, 0
    %v1605 = vsel %vm828, %v1594, 0
    %v1608 = vsel %vm828, %v1595, 0
    %1610 = vmatpush.msra.mxu0 0.0
    %1611 = vmatpush.msra.mxu0 0.0
    %1612 = vmatpush.msra.mxu0 0.0
    %1613 = vmatpush.msra.mxu0 0.0
    %1614 = vmatpush.msra.mxu0 0.0
    %1615 = vmatpush.msra.mxu0 0.0
    %1616 = vmatpush.msra.mxu0 0.0
    %1617 = vmatpush.msra.mxu0 0.0
    %1618 = vmatpush.msra.mxu0 0.0
    %1619 = vmatpush.msra.mxu0 0.0
    %1620 = vmatpush.msra.mxu0 0.0
    %1621 = vmatpush.msra.mxu0 0.0
    %1622 = vmatpush.msra.mxu0 %v1599
    %1623 = vmatpush.msra.mxu0 %v1598
    %1624 = vmatpush.msra.mxu0 %v1597
    %1625 = vmatpush.msra.mxu0 %v1596
    %1626 = vmatmul.f32.gmra.mxu0 %v1605
    %v1627 = vpop.f32.mrf.mxu0
    %v1628 = vadd.f32 %v1602, %v1627
    %1629 = vmatmul.f32.gmra.mxu0 %v1608
    %v1630 = vpop.f32.mrf.mxu0
    %v1631 = vadd.f32 %v1602, %v1630
    %1632 = vdwg.mxu0
    %1633 = vst [vmem:[%s67] sm:$0xff] %v1628
    %1634 = vst [vmem:[%s67 + $0x8] sm:$0xff] %v1631
    // Predicated region
    $region134: #{htr_seq2seq_forward.1} parent=1 // pred_check
      _
    $region135: #{htr_seq2seq_forward.1} parent=1 // pred_check_branch
      %1636 = sbr.rel (0) target = $region137
    $region136: #{htr_seq2seq_forward.1} parent=1 // pred_region
      _
    $region137: #{htr_seq2seq_forward.1} parent=1 // pred_fallthru
      _
    // Predicated region
    $region138: #{htr_seq2seq_forward.1} parent=1 // pred_check
      _
    $region139: #{htr_seq2seq_forward.1} parent=1 // pred_check_branch
      %1638 = sbr.rel (0) target = $region141
    $region140: #{htr_seq2seq_forward.1} parent=1 // pred_region
      %1640 = vsyncadd [#allocation3], 0
      %s1641 = sshll.u32 [#allocation2], 4
      %s1642 = int_to_ptr.vmem [resolvable:$true] %s1641
      %s1643 = sshll.u32 %s69, 4
      %s1644 = int_to_ptr.hbm [resolvable:$true] %s1643
      %1649 = dma.vmem_to_hbm [thread:$0]  %s1642, 256, %s1644, [#allocation3], 128, 128, 8
    $region141: #{htr_seq2seq_forward.1} parent=1 // pred_fallthru
      _
    // Predicated region
    $region142: #{htr_seq2seq_forward.1} parent=1 // pred_check
      _
    $region143: #{htr_seq2seq_forward.1} parent=1 // pred_check_branch
      %1651 = sbr.rel (0) target = $region145
    $region144: #{htr_seq2seq_forward.1} parent=1 // pred_region
      %1653 = vsyncadd [#allocation5], 0
      %s1654 = sshll.u32 [#allocation4], 4
      %s1655 = int_to_ptr.vmem [resolvable:$true] %s1654
      %s1656 = sshll.u32 %s71, 4
      %s1657 = int_to_ptr.hbm [resolvable:$true] %s1656
      %1662 = dma.vmem_to_hbm [thread:$0]  %s1655, 256, %s1657, [#allocation5], 128, 128, 8
    $region145: #{htr_seq2seq_forward.1} parent=1 // pred_fallthru
      _
    // Predicated region
    $region146: #{htr_seq2seq_forward.1} parent=1 // pred_check
      _
    $region147: #{htr_seq2seq_forward.1} parent=1 // pred_check_branch
      %1664 = sbr.rel (0) target = $region149
    $region148: #{htr_seq2seq_forward.1} parent=1 // pred_region
      _
    $region149: #{htr_seq2seq_forward.1} parent=1 // pred_fallthru
      _
    // Predicated region
    $region150: #{htr_seq2seq_forward.1} parent=1 // pred_check
      _
    $region151: #{htr_seq2seq_forward.1} parent=1 // pred_check_branch
      %1666 = sbr.rel (0) target = $region153
    $region152: #{htr_seq2seq_forward.1} parent=1 // pred_region
      %1668 = dma.done [#allocation3], 256
    $region153: #{htr_seq2seq_forward.1} parent=1 // pred_fallthru
      _
    // Predicated region
    $region154: #{htr_seq2seq_forward.1} parent=1 // pred_check
      _
    $region155: #{htr_seq2seq_forward.1} parent=1 // pred_check_branch
      %1670 = sbr.rel (0) target = $region157
    $region156: #{htr_seq2seq_forward.1} parent=1 // pred_region
      %1672 = dma.done [#allocation5], 256
    $region157: #{htr_seq2seq_forward.1} parent=1 // pred_fallthru
      _
    %1673 = vsyncpa [#allocation3], 1
    %1674 = vsyncpa [#allocation5], 1

</llo_original>
